<compile_context>
chip_gen: v7x
topology: tpu7x:2x2x1
jax: 0.10.0
libtpu: 0.0.40
codegen_flags: <defaults>
</compile_context>

<pallas_src>
import functools

import jax
import jax.numpy as jnp
from jax.experimental import pallas as pl
from jax.experimental.pallas import tpu as pltpu


# ----------------------------------------------------------------------------
# Kernel
# ----------------------------------------------------------------------------
def _composition_kernel(*refs, normalize, matmul_dtype, pad_feature):
    if pad_feature:
        (f1_ref, f2_ref, eye_ref, w1a_ref, w1b_ref, b1_ref,
         w2_ref, b2_ref, out_ref, feat_ref) = refs
    else:
        (f1_ref, f2_ref, w1a_ref, w1b_ref, b1_ref,
         w2_ref, b2_ref, out_ref, feat_ref) = refs
        eye_ref = None

    f1 = f1_ref[...].astype(jnp.float32)
    f2 = f2_ref[...].astype(jnp.float32)

    if normalize:
        # F.normalize(x, dim=1): x / max(||x||, 1e-12)
        #   == x * rsqrt(max(||x||^2, (1e-12)^2))      (EUP rsqrt, no divide)
        eps2 = jnp.float32(1e-24)
        inv1 = jax.lax.rsqrt(jnp.maximum(jnp.sum(f1 * f1, axis=1, keepdims=True), eps2))
        inv2 = jax.lax.rsqrt(jnp.maximum(jnp.sum(f2 * f2, axis=1, keepdims=True), eps2))
        f1_in = f1 * inv1
        f2_in = f2 * inv2
    else:
        f1_in = f1
        f2_in = f2

    # residual = cat(f1_in, f2_in, dim=1) @ W1^T + b1
    #          = f1_in @ W1a + f2_in @ W1b + b1      (f32 accumulation)
    # W1a/W1b/b1 are zero-padded to Hp output lanes, so `residual` (and hence
    # `feature`) is already a lane-dense (tile_b, Hp) slab with exact zeros in
    # the pad lanes.
    residual = (
        jnp.dot(f1_in.astype(matmul_dtype), w1a_ref[...],
                preferred_element_type=jnp.float32)
        + jnp.dot(f2_in.astype(matmul_dtype), w1b_ref[...],
                  preferred_element_type=jnp.float32)
        + b1_ref[...]
    )

    if pad_feature:
        # feature = f1 + residual, with the raw (unnormalized, f32) f1 embedded
        # into the Hp-wide slab via a tiny exact f32 matmul with [I | 0].  This
        # keeps the feature store and the fc matmul K-dim lane-dense without
        # any in-kernel concat/pad or per-forward XLA copies.
        f1_emb = jnp.dot(f1, eye_ref[...], preferred_element_type=jnp.float32)
        feature = f1_emb + residual
    else:
        feature = f1 + residual

    # out = feature @ W2^T + b2   (class dim lane-padded to Cp)
    out = (
        jnp.dot(feature.astype(matmul_dtype), w2_ref[...],
                preferred_element_type=jnp.float32)
        + b2_ref[...]
    )

    out_ref[...] = out.astype(out_ref.dtype)
    feat_ref[...] = feature.astype(feat_ref.dtype)


# ----------------------------------------------------------------------------
# Parameter preparation (one-time layout work, hoisted out of the forward)
# ----------------------------------------------------------------------------
def _round_up(x, m):
    return ((x + m - 1) // m) * m


def prepare_params(params, *, matmul_dtype=jnp.bfloat16, lane=128):
    """Transpose / split / zero-pad PyTorch-style weights once.

    params: dict with
        w1: (H, 2H)  mlp.weight      b1: (H,)  mlp.bias
        w2: (C, H)   fc.weight       b2: (C,)  fc.bias
    """
    w1, b1, w2, b2 = params["w1"], params["b1"], params["w2"], params["b2"]
    H, H2 = w1.shape
    assert H2 == 2 * H, "mlp weight must be (half_input_dim, input_dim)"
    C = w2.shape[0]
    assert w2.shape == (C, H) and b1.shape == (H,) and b2.shape == (C,)

    Hp = _round_up(H, lane)   # lane-dense feature / mlp-output width
    Cp = _round_up(C, lane)   # lane-dense logits width
    pad_feature = Hp != H

    w1t = jnp.transpose(w1)                                     # (2H, H)
    w1a = w1t[:H, :].astype(matmul_dtype)                       # acts on f1
    w1b = w1t[H:, :].astype(matmul_dtype)                       # acts on f2
    w1a_p = jnp.zeros((H, Hp), matmul_dtype).at[:, :H].set(w1a)
    w1b_p = jnp.zeros((H, Hp), matmul_dtype).at[:, :H].set(w1b)
    b1_p = jnp.zeros((1, Hp), jnp.float32).at[:, :H].set(b1.astype(jnp.float32))

    w2t = jnp.transpose(w2).astype(matmul_dtype)                # (H, C)
    w2_p = jnp.zeros((Hp, Cp), matmul_dtype).at[:H, :C].set(w2t)
    b2_p = jnp.zeros((1, Cp), jnp.float32).at[:, :C].set(b2.astype(jnp.float32))

    prepared = {
        "w1a": w1a_p, "w1b": w1b_p, "b1": b1_p,
        "w2t": w2_p, "b2": b2_p,
        "num_classes": C, "half_dim": H,
    }
    if pad_feature:
        # [I | 0] in f32: used to embed the raw f1 into the Hp-wide slab
        # exactly (kept f32 so the f1 term of `feature` is bit-faithful even on
        # the bf16 matmul path).
        prepared["eye"] = (
            jnp.zeros((H, Hp), jnp.float32).at[:, :H].set(jnp.eye(H, dtype=jnp.float32)))
    return prepared


def _vmem_capacity_bytes():
    try:
        cap = getattr(pltpu.get_tpu_info(), "vmem_capacity_bytes", None)
        if cap:
            return int(cap)
    except Exception:
        pass
    return 64 << 20  # conservative fallback: v7x per-TC VMEM


# Cache: does this jax build accept pl.Buffered(1) on constant BlockSpecs?
_BUFFERED_WEIGHTS_OK = None


# ----------------------------------------------------------------------------
# Forward wrapper
# ----------------------------------------------------------------------------
def composition_classifier(f1, f2, prepared, *, normalization_sign=False,
                           tile_b=512, input_buffer_count=None,
                           out_dtype=jnp.float32):
    """Pallas forward of CompositionClassifier.

    f1, f2: (B, H) modality features.
    prepared: output of prepare_params().
    input_buffer_count: optional pipeline depth for the activation tiles
        (e.g. 3 on v5e where the kernel is DMA-latency bound at small H).
    Returns (out, feature) with shapes (B, C) and (B, H) in `out_dtype`.
    """
    global _BUFFERED_WEIGHTS_OK

    B, H = f1.shape
    assert f2.shape == (B, H)
    assert prepared["half_dim"] == H

    w1a, w1b = prepared["w1a"], prepared["w1b"]
    b1, w2t, b2 = prepared["b1"], prepared["w2t"], prepared["b2"]
    C = prepared["num_classes"]
    Hp = w1a.shape[1]
    Cp = w2t.shape[1]
    pad_feature = "eye" in prepared
    matmul_dtype = w1a.dtype
    w_itemsize = jnp.dtype(matmul_dtype).itemsize

    # ---- Batch tiling: no input pad; Pallas handles the ragged last block
    # (garbage rows are row-confined and their output writes are masked).
    b_ceil = _round_up(B, 8)
    tile_b_eff = max(8, min(tile_b, b_ceil))
    if b_ceil >= 16:
        # Guarantee >= 2 grid steps so the "parallel" axis can shard across
        # v7x's two TensorCores (near-free ~2x there; harmless elsewhere).
        tile_b_eff = min(tile_b_eff, max(8, _round_up(pl.cdiv(B, 2), 8)))
    grid = (pl.cdiv(B, tile_b_eff),)

    # ---- VMEM budget: pipelined activation tiles + resident weights + outputs.
    act_item = jnp.dtype(f1.dtype).itemsize
    out_item = jnp.dtype(out_dtype).itemsize
    weight_bytes = (2 * H * Hp + Hp * Cp) * w_itemsize + (Hp + Cp) * 4
    if pad_feature:
        weight_bytes += H * Hp * 4          # f32 [I | 0]
    act_tile_bytes = tile_b_eff * H * act_item
    out_tile_bytes = tile_b_eff * (Cp + Hp) * out_item
    in_depth = input_buffer_count if input_buffer_count else 2
    needed = (in_depth * 2 * act_tile_bytes   # f1 + f2 tiles, pipelined
              + 2 * weight_bytes              # margin even if single-buffered
              + 2 * out_tile_bytes            # double-buffered outputs
              + (2 << 20))                    # Mosaic internal scratch headroom
    vmem_limit = int(min(max(needed, 16 << 20), (_vmem_capacity_bytes() * 3) // 4))

    flops = 2 * B * (2 * H * Hp + Hp * Cp)
    if pad_feature:
        flops += 2 * B * H * Hp
    cost = pl.CostEstimate(
        flops=flops,
        transcendentals=(2 * B) if normalization_sign else 0,
        bytes_accessed=2 * B * H * act_item + weight_bytes + B * (Cp + Hp) * out_item,
    )

    kernel = functools.partial(
        _composition_kernel, normalize=normalization_sign,
        matmul_dtype=matmul_dtype, pad_feature=pad_feature)

    def _build(weight_buffers, input_buffers):
        wkw = {"pipeline_mode": pl.Buffered(weight_buffers)} if weight_buffers else {}
        ikw = {"pipeline_mode": pl.Buffered(input_buffers)} if input_buffers else {}
        batch_in = lambda cols: pl.BlockSpec((tile_b_eff, cols), lambda i: (i, 0), **ikw)
        batch_out = lambda cols: pl.BlockSpec((tile_b_eff, cols), lambda i: (i, 0))
        const = lambda r, c: pl.BlockSpec((r, c), lambda i: (0, 0), **wkw)

        in_specs = [batch_in(H), batch_in(H)]          # f1, f2
        if pad_feature:
            in_specs.append(const(H, Hp))              # [I | 0]
        in_specs += [
            const(H, Hp),                              # w1a
            const(H, Hp),                              # w1b
            const(1, Hp),                              # b1
            const(Hp, Cp),                             # w2t (lane-padded)
            const(1, Cp),                              # b2  (lane-padded)
        ]
        return pl.pallas_call(
            kernel,
            out_shape=(
                jax.ShapeDtypeStruct((B, Cp), out_dtype),   # logits (lane-padded)
                jax.ShapeDtypeStruct((B, Hp), out_dtype),   # feature (lane-padded)
            ),
            grid_spec=pltpu.PrefetchScalarGridSpec(
                num_scalar_prefetch=0,
                grid=grid,
                in_specs=in_specs,
                out_specs=[batch_out(Cp), batch_out(Hp)],
            ),
            compiler_params=pltpu.CompilerParams(
                dimension_semantics=("parallel",),
                vmem_limit_bytes=vmem_limit,
            ),
            cost_estimate=cost,
        )

    args = [f1, f2]
    if pad_feature:
        args.append(prepared["eye"])
    args += [w1a, w1b, b1, w2t, b2]

    if _BUFFERED_WEIGHTS_OK is False:
        out_pad, feat_pad = _build(None, None)(*args)
    else:
        try:
            # Single-buffer the constant weight/bias blocks (frees VMEM,
            # matters most under v7x's 64 MiB budget).
            out_pad, feat_pad = _build(1, input_buffer_count)(*args)
            _BUFFERED_WEIGHTS_OK = True
        except Exception:
            # This jax build does not accept pl.Buffered(1) on constant blocks
            # (or the deeper input pipeline); fall back to default buffering.
            _BUFFERED_WEIGHTS_OK = False
            out_pad, feat_pad = _build(None, None)(*args)

    out = out_pad[:, :C] if Cp != C else out_pad
    feature = feat_pad[:, :H] if Hp != H else feat_pad
    return out, feature


# ----------------------------------------------------------------------------
# Init + pure-JAX reference
# ----------------------------------------------------------------------------
def init_params(key, input_dim, num_classes, dtype=jnp.float32):
    """Deterministic init mimicking nn.Linear default (uniform +/- 1/sqrt(fan_in))."""
    half = input_dim // 2
    k1, k2, k3, k4 = jax.random.split(key, 4)
    lim1 = 1.0 / jnp.sqrt(input_dim)
    lim2 = 1.0 / jnp.sqrt(half)
    return {
        "w1": jax.random.uniform(k1, (half, input_dim), dtype, -lim1, lim1),
        "b1": jax.random.uniform(k2, (half,), dtype, -lim1, lim1),
        "w2": jax.random.uniform(k3, (num_classes, half), dtype, -lim2, lim2),
        "b2": jax.random.uniform(k4, (num_classes,), dtype, -lim2, lim2),
    }


def _reference(f1, f2, params, normalization_sign=False):
    """Pure-JAX reference of the PyTorch forward."""
    if normalization_sign:
        eps = 1e-12
        f1n = f1 / jnp.maximum(jnp.linalg.norm(f1, axis=1, keepdims=True), eps)
        f2n = f2 / jnp.maximum(jnp.linalg.norm(f2, axis=1, keepdims=True), eps)
        residual = jnp.concatenate([f1n, f2n], axis=1)
    else:
        residual = jnp.concatenate([f1, f2], axis=1)
    residual = residual @ params["w1"].T + params["b1"]
    feature = f1 + residual
    out = feature @ params["w2"].T + params["b2"]
    return out, feature


if __name__ == "__main__":
    HALF = 64             # half_input_dim (= dim of each modality feature)
    INPUT_DIM = 2 * HALF  # input_dim of the module
    NUM_CLASSES = 16

    key = jax.random.PRNGKey(0)
    kf1, kf2, kp = jax.random.split(key, 3)
    params = init_params(kp, INPUT_DIM, NUM_CLASSES)

    # One-time layout work (hoisted out of the forward pass).
    prepared_bf16 = prepare_params(params, matmul_dtype=jnp.bfloat16)   # production
    prepared_f32 = prepare_params(params, matmul_dtype=jnp.float32)     # validation only

    B = 8
    f1 = jax.random.normal(kf1, (B, HALF), jnp.float32)
    f2 = jax.random.normal(kf2, (B, HALF), jnp.float32)

    for norm in (False, True):
        ref_out, ref_feat = _reference(f1, f2, params, normalization_sign=norm)

        # f32 MXU path: tight tolerance.
        out, feat = composition_classifier(f1, f2, prepared_f32,
                                           normalization_sign=norm)
        out, feat = jax.block_until_ready((out, feat))
        assert out.shape == (B, NUM_CLASSES) and feat.shape == (B, HALF)
        assert jnp.allclose(out, ref_out, atol=1e-4, rtol=1e-4)
        assert jnp.allclose(feat, ref_feat, atol=1e-4, rtol=1e-4)

        # bf16 MXU path (production): looser tolerance.
        out_b, feat_b = composition_classifier(f1, f2, prepared_bf16,
                                               normalization_sign=norm)
        out_b, feat_b = jax.block_until_ready((out_b, feat_b))
        assert jnp.allclose(out_b, ref_out, atol=5e-2, rtol=5e-2)
        assert jnp.allclose(feat_b, ref_feat, atol=5e-2, rtol=5e-2)

    # Multi-step grid (>= 2 tiles for v7x TC sharding) + ragged last batch block.
    B2 = 24
    g1 = jax.random.normal(jax.random.PRNGKey(1), (B2, HALF), jnp.float32)
    g2 = jax.random.normal(jax.random.PRNGKey(2), (B2, HALF), jnp.float32)
    ref_out2, ref_feat2 = _reference(g1, g2, params, normalization_sign=True)
    out2, feat2 = composition_classifier(g1, g2, prepared_bf16,
                                         normalization_sign=True)
    out2, feat2 = jax.block_until_ready((out2, feat2))
    assert out2.shape == (B2, NUM_CLASSES) and feat2.shape == (B2, HALF)
    assert jnp.allclose(out2, ref_out2, atol=5e-2, rtol=5e-2)
    assert jnp.allclose(feat2, ref_feat2, atol=5e-2, rtol=5e-2)

    print("KERNEL_OK")
</pallas_src>

<mosaic_0001>
module attributes {stable_mosaic.version = 11 : i64} {
  func.func @_composition_kernel(%arg0: i32, %arg1: memref<8x64xf32, #tpu.memory_space<vmem>>, %arg2: memref<8x64xf32, #tpu.memory_space<vmem>>, %arg3: memref<64x128xf32, #tpu.memory_space<vmem>>, %arg4: memref<64x128xf32, #tpu.memory_space<vmem>>, %arg5: memref<64x128xf32, #tpu.memory_space<vmem>>, %arg6: memref<1x128xf32, #tpu.memory_space<vmem>>, %arg7: memref<128x128xf32, #tpu.memory_space<vmem>>, %arg8: memref<1x128xf32, #tpu.memory_space<vmem>>, %arg9: memref<8x128xf32, #tpu.memory_space<vmem>>, %arg10: memref<8x128xf32, #tpu.memory_space<vmem>>) attributes {dimension_semantics = [#tpu.dimension_semantics<parallel>], iteration_bounds = array<i64: 1>, scalar_prefetch = 0 : i64, scratch_operands = 0 : i64, tpu.core_type = #tpu.core_type<tc>, window_params = [{transform_indices = @transform_0, window_bounds = array<i64: 8, 64>}, {transform_indices = @transform_1, window_bounds = array<i64: 8, 64>}, {pipeline_mode = #tpu.pipeline_mode<synchronous>, transform_indices = @transform_2, window_bounds = array<i64: 64, 128>}, {pipeline_mode = #tpu.pipeline_mode<synchronous>, transform_indices = @transform_3, window_bounds = array<i64: 64, 128>}, {pipeline_mode = #tpu.pipeline_mode<synchronous>, transform_indices = @transform_4, window_bounds = array<i64: 64, 128>}, {pipeline_mode = #tpu.pipeline_mode<synchronous>, transform_indices = @transform_5, window_bounds = array<i64: 1, 128>}, {pipeline_mode = #tpu.pipeline_mode<synchronous>, transform_indices = @transform_6, window_bounds = array<i64: 128, 128>}, {pipeline_mode = #tpu.pipeline_mode<synchronous>, transform_indices = @transform_7, window_bounds = array<i64: 1, 128>}, {transform_indices = @transform_8, window_bounds = array<i64: 8, 128>}, {transform_indices = @transform_9, window_bounds = array<i64: 8, 128>}]} {
    %c0 = arith.constant 0 : index
    %c0_0 = arith.constant 0 : index
    %0 = vector.load %arg1[%c0, %c0_0] : memref<8x64xf32, #tpu.memory_space<vmem>>, vector<8x64xf32>
    %c0_1 = arith.constant 0 : index
    %c0_2 = arith.constant 0 : index
    %1 = vector.load %arg2[%c0_1, %c0_2] : memref<8x64xf32, #tpu.memory_space<vmem>>, vector<8x64xf32>
    %c0_3 = arith.constant 0 : index
    %c0_4 = arith.constant 0 : index
    %2 = vector.load %arg4[%c0_3, %c0_4] : memref<64x128xf32, #tpu.memory_space<vmem>>, vector<64x128xf32>
    %cst = arith.constant dense<0.000000e+00> : vector<8x128xf32>
    %3 = tpu.matmul %0, %2, %cst {dimension_numbers = #tpu.dot_dimension_numbers<[1], [0], [0], [1], [0, 0, 1, 1], [], []>} : vector<8x64xf32>, vector<64x128xf32>, vector<8x128xf32> -> vector<8x128xf32>
    %c0_5 = arith.constant 0 : index
    %c0_6 = arith.constant 0 : index
    %4 = vector.load %arg5[%c0_5, %c0_6] : memref<64x128xf32, #tpu.memory_space<vmem>>, vector<64x128xf32>
    %cst_7 = arith.constant dense<0.000000e+00> : vector<8x128xf32>
    %5 = tpu.matmul %1, %4, %cst_7 {dimension_numbers = #tpu.dot_dimension_numbers<[1], [0], [0], [1], [0, 0, 1, 1], [], []>} : vector<8x64xf32>, vector<64x128xf32>, vector<8x128xf32> -> vector<8x128xf32>
    %6 = arith.addf %3, %5 : vector<8x128xf32>
    %c0_8 = arith.constant 0 : index
    %c0_9 = arith.constant 0 : index
    %7 = vector.load %arg6[%c0_8, %c0_9] : memref<1x128xf32, #tpu.memory_space<vmem>>, vector<1x128xf32>
    %8 = vector.broadcast %7 : vector<1x128xf32> to vector<8x128xf32>
    %9 = arith.addf %6, %8 : vector<8x128xf32>
    %c0_10 = arith.constant 0 : index
    %c0_11 = arith.constant 0 : index
    %10 = vector.load %arg3[%c0_10, %c0_11] : memref<64x128xf32, #tpu.memory_space<vmem>>, vector<64x128xf32>
    %cst_12 = arith.constant dense<0.000000e+00> : vector<8x128xf32>
    %11 = tpu.matmul %0, %10, %cst_12 {dimension_numbers = #tpu.dot_dimension_numbers<[1], [0], [0], [1], [0, 0, 1, 1], [], []>} : vector<8x64xf32>, vector<64x128xf32>, vector<8x128xf32> -> vector<8x128xf32>
    %12 = arith.addf %11, %9 : vector<8x128xf32>
    %c0_13 = arith.constant 0 : index
    %c0_14 = arith.constant 0 : index
    %13 = vector.load %arg7[%c0_13, %c0_14] : memref<128x128xf32, #tpu.memory_space<vmem>>, vector<128x128xf32>
    %cst_15 = arith.constant dense<0.000000e+00> : vector<8x128xf32>
    %14 = tpu.matmul %12, %13, %cst_15 {dimension_numbers = #tpu.dot_dimension_numbers<[1], [0], [0], [1], [0, 0, 1, 1], [], []>} : vector<8x128xf32>, vector<128x128xf32>, vector<8x128xf32> -> vector<8x128xf32>
    %c0_16 = arith.constant 0 : index
    %c0_17 = arith.constant 0 : index
    %15 = vector.load %arg8[%c0_16, %c0_17] : memref<1x128xf32, #tpu.memory_space<vmem>>, vector<1x128xf32>
    %16 = vector.broadcast %15 : vector<1x128xf32> to vector<8x128xf32>
    %17 = arith.addf %14, %16 : vector<8x128xf32>
    %c0_18 = arith.constant 0 : index
    %c0_19 = arith.constant 0 : index
    %18 = vector.load %arg9[%c0_18, %c0_19] : memref<8x128xf32, #tpu.memory_space<vmem>>, vector<8x128xf32>
    tpu.vector_store %arg9[%c0_18, %c0_19], %17 {strides = array<i32>} : memref<8x128xf32, #tpu.memory_space<vmem>>, vector<8x128xf32>,
    %c0_20 = arith.constant 0 : index
    %c0_21 = arith.constant 0 : index
    %19 = vector.load %arg10[%c0_20, %c0_21] : memref<8x128xf32, #tpu.memory_space<vmem>>, vector<8x128xf32>
    tpu.vector_store %arg10[%c0_20, %c0_21], %12 {strides = array<i32>} : memref<8x128xf32, #tpu.memory_space<vmem>>, vector<8x128xf32>,
    return
  }
  func.func @transform_0(%arg0: i32) -> (i32, i32) {
    %c0_i32 = arith.constant 0 : i32
    %c0_i32_0 = arith.constant 0 : i32
    return %arg0, %c0_i32 : i32, i32
  }
  func.func @transform_1(%arg0: i32) -> (i32, i32) {
    %c0_i32 = arith.constant 0 : i32
    %c0_i32_0 = arith.constant 0 : i32
    return %arg0, %c0_i32 : i32, i32
  }
  func.func @transform_2(%arg0: i32) -> (i32, i32) {
    %c0_i32 = arith.constant 0 : i32
    %c0_i32_0 = arith.constant 0 : i32
    %c0_i32_1 = arith.constant 0 : i32
    return %c0_i32, %c0_i32_0 : i32, i32
  }
  func.func @transform_3(%arg0: i32) -> (i32, i32) {
    %c0_i32 = arith.constant 0 : i32
    %c0_i32_0 = arith.constant 0 : i32
    %c0_i32_1 = arith.constant 0 : i32
    return %c0_i32, %c0_i32_0 : i32, i32
  }
  func.func @transform_4(%arg0: i32) -> (i32, i32) {
    %c0_i32 = arith.constant 0 : i32
    %c0_i32_0 = arith.constant 0 : i32
    %c0_i32_1 = arith.constant 0 : i32
    return %c0_i32, %c0_i32_0 : i32, i32
  }
  func.func @transform_5(%arg0: i32) -> (i32, i32) {
    %c0_i32 = arith.constant 0 : i32
    %c0_i32_0 = arith.constant 0 : i32
    %c0_i32_1 = arith.constant 0 : i32
    return %c0_i32, %c0_i32_0 : i32, i32
  }
  func.func @transform_6(%arg0: i32) -> (i32, i32) {
    %c0_i32 = arith.constant 0 : i32
    %c0_i32_0 = arith.constant 0 : i32
    %c0_i32_1 = arith.constant 0 : i32
    return %c0_i32, %c0_i32_0 : i32, i32
  }
  func.func @transform_7(%arg0: i32) -> (i32, i32) {
    %c0_i32 = arith.constant 0 : i32
    %c0_i32_0 = arith.constant 0 : i32
    %c0_i32_1 = arith.constant 0 : i32
    return %c0_i32, %c0_i32_0 : i32, i32
  }
  func.func @transform_8(%arg0: i32) -> (i32, i32) {
    %c0_i32 = arith.constant 0 : i32
    %c0_i32_0 = arith.constant 0 : i32
    return %arg0, %c0_i32 : i32, i32
  }
  func.func @transform_9(%arg0: i32) -> (i32, i32) {
    %c0_i32 = arith.constant 0 : i32
    %c0_i32_0 = arith.constant 0 : i32
    return %arg0, %c0_i32 : i32, i32
  }
}

module attributes {stable_mosaic.version = 11 : i64} {
  func.func @_composition_kernel(%arg0: i32, %arg1: memref<8x64xf32, #tpu.memory_space<vmem>>, %arg2: memref<8x64xf32, #tpu.memory_space<vmem>>, %arg3: memref<64x128xf32, #tpu.memory_space<vmem>>, %arg4: memref<64x128xf32, #tpu.memory_space<vmem>>, %arg5: memref<64x128xf32, #tpu.memory_space<vmem>>, %arg6: memref<1x128xf32, #tpu.memory_space<vmem>>, %arg7: memref<128x128xf32, #tpu.memory_space<vmem>>, %arg8: memref<1x128xf32, #tpu.memory_space<vmem>>, %arg9: memref<8x128xf32, #tpu.memory_space<vmem>>, %arg10: memref<8x128xf32, #tpu.memory_space<vmem>>) attributes {dimension_semantics = [#tpu.dimension_semantics<parallel>], iteration_bounds = array<i64: 1>, scalar_prefetch = 0 : i64, scratch_operands = 0 : i64, tpu.core_type = #tpu.core_type<tc>, window_params = [{transform_indices = @transform_0, window_bounds = array<i64: 8, 64>}, {transform_indices = @transform_1, window_bounds = array<i64: 8, 64>}, {pipeline_mode = #tpu.pipeline_mode<synchronous>, transform_indices = @transform_2, window_bounds = array<i64: 64, 128>}, {pipeline_mode = #tpu.pipeline_mode<synchronous>, transform_indices = @transform_3, window_bounds = array<i64: 64, 128>}, {pipeline_mode = #tpu.pipeline_mode<synchronous>, transform_indices = @transform_4, window_bounds = array<i64: 64, 128>}, {pipeline_mode = #tpu.pipeline_mode<synchronous>, transform_indices = @transform_5, window_bounds = array<i64: 1, 128>}, {pipeline_mode = #tpu.pipeline_mode<synchronous>, transform_indices = @transform_6, window_bounds = array<i64: 128, 128>}, {pipeline_mode = #tpu.pipeline_mode<synchronous>, transform_indices = @transform_7, window_bounds = array<i64: 1, 128>}, {transform_indices = @transform_8, window_bounds = array<i64: 8, 128>}, {transform_indices = @transform_9, window_bounds = array<i64: 8, 128>}]} {
    %c0 = arith.constant 0 : index
    %c0_0 = arith.constant 0 : index
    %0 = vector.load %arg1[%c0, %c0_0] : memref<8x64xf32, #tpu.memory_space<vmem>>, vector<8x64xf32>
    %c0_1 = arith.constant 0 : index
    %c0_2 = arith.constant 0 : index
    %1 = vector.load %arg2[%c0_1, %c0_2] : memref<8x64xf32, #tpu.memory_space<vmem>>, vector<8x64xf32>
    %c0_3 = arith.constant 0 : index
    %c0_4 = arith.constant 0 : index
    %2 = vector.load %arg4[%c0_3, %c0_4] : memref<64x128xf32, #tpu.memory_space<vmem>>, vector<64x128xf32>
    %cst = arith.constant dense<0.000000e+00> : vector<8x128xf32>
    %3 = tpu.matmul %0, %2, %cst {dimension_numbers = #tpu.dot_dimension_numbers<[1], [0], [0], [1], [0, 0, 1, 1], [], []>} : vector<8x64xf32>, vector<64x128xf32>, vector<8x128xf32> -> vector<8x128xf32>
    %c0_5 = arith.constant 0 : index
    %c0_6 = arith.constant 0 : index
    %4 = vector.load %arg5[%c0_5, %c0_6] : memref<64x128xf32, #tpu.memory_space<vmem>>, vector<64x128xf32>
    %cst_7 = arith.constant dense<0.000000e+00> : vector<8x128xf32>
    %5 = tpu.matmul %1, %4, %cst_7 {dimension_numbers = #tpu.dot_dimension_numbers<[1], [0], [0], [1], [0, 0, 1, 1], [], []>} : vector<8x64xf32>, vector<64x128xf32>, vector<8x128xf32> -> vector<8x128xf32>
    %6 = arith.addf %3, %5 : vector<8x128xf32>
    %c0_8 = arith.constant 0 : index
    %c0_9 = arith.constant 0 : index
    %7 = vector.load %arg6[%c0_8, %c0_9] : memref<1x128xf32, #tpu.memory_space<vmem>>, vector<1x128xf32>
    %8 = vector.broadcast %7 : vector<1x128xf32> to vector<8x128xf32>
    %9 = arith.addf %6, %8 : vector<8x128xf32>
    %c0_10 = arith.constant 0 : index
    %c0_11 = arith.constant 0 : index
    %10 = vector.load %arg3[%c0_10, %c0_11] : memref<64x128xf32, #tpu.memory_space<vmem>>, vector<64x128xf32>
    %cst_12 = arith.constant dense<0.000000e+00> : vector<8x128xf32>
    %11 = tpu.matmul %0, %10, %cst_12 {dimension_numbers = #tpu.dot_dimension_numbers<[1], [0], [0], [1], [0, 0, 1, 1], [], []>} : vector<8x64xf32>, vector<64x128xf32>, vector<8x128xf32> -> vector<8x128xf32>
    %12 = arith.addf %11, %9 : vector<8x128xf32>
    %c0_13 = arith.constant 0 : index
    %c0_14 = arith.constant 0 : index
    %13 = vector.load %arg7[%c0_13, %c0_14] : memref<128x128xf32, #tpu.memory_space<vmem>>, vector<128x128xf32>
    %cst_15 = arith.constant dense<0.000000e+00> : vector<8x128xf32>
    %14 = tpu.matmul %12, %13, %cst_15 {dimension_numbers = #tpu.dot_dimension_numbers<[1], [0], [0], [1], [0, 0, 1, 1], [], []>} : vector<8x128xf32>, vector<128x128xf32>, vector<8x128xf32> -> vector<8x128xf32>
    %c0_16 = arith.constant 0 : index
    %c0_17 = arith.constant 0 : index
    %15 = vector.load %arg8[%c0_16, %c0_17] : memref<1x128xf32, #tpu.memory_space<vmem>>, vector<1x128xf32>
    %16 = vector.broadcast %15 : vector<1x128xf32> to vector<8x128xf32>
    %17 = arith.addf %14, %16 : vector<8x128xf32>
    %c0_18 = arith.constant 0 : index
    %c0_19 = arith.constant 0 : index
    %18 = vector.load %arg9[%c0_18, %c0_19] : memref<8x128xf32, #tpu.memory_space<vmem>>, vector<8x128xf32>
    tpu.vector_store %arg9[%c0_18, %c0_19], %17 {strides = array<i32>} : memref<8x128xf32, #tpu.memory_space<vmem>>, vector<8x128xf32>,
    %c0_20 = arith.constant 0 : index
    %c0_21 = arith.constant 0 : index
    %19 = vector.load %arg10[%c0_20, %c0_21] : memref<8x128xf32, #tpu.memory_space<vmem>>, vector<8x128xf32>
    tpu.vector_store %arg10[%c0_20, %c0_21], %12 {strides = array<i32>} : memref<8x128xf32, #tpu.memory_space<vmem>>, vector<8x128xf32>,
    return
  }
  func.func @transform_0(%arg0: i32) -> (i32, i32) {
    %c0_i32 = arith.constant 0 : i32
    %c0_i32_0 = arith.constant 0 : i32
    return %arg0, %c0_i32 : i32, i32
  }
  func.func @transform_1(%arg0: i32) -> (i32, i32) {
    %c0_i32 = arith.constant 0 : i32
    %c0_i32_0 = arith.constant 0 : i32
    return %arg0, %c0_i32 : i32, i32
  }
  func.func @transform_2(%arg0: i32) -> (i32, i32) {
    %c0_i32 = arith.constant 0 : i32
    %c0_i32_0 = arith.constant 0 : i32
    %c0_i32_1 = arith.constant 0 : i32
    return %c0_i32, %c0_i32_0 : i32, i32
  }
  func.func @transform_3(%arg0: i32) -> (i32, i32) {
    %c0_i32 = arith.constant 0 : i32
    %c0_i32_0 = arith.constant 0 : i32
    %c0_i32_1 = arith.constant 0 : i32
    return %c0_i32, %c0_i32_0 : i32, i32
  }
  func.func @transform_4(%arg0: i32) -> (i32, i32) {
    %c0_i32 = arith.constant 0 : i32
    %c0_i32_0 = arith.constant 0 : i32
    %c0_i32_1 = arith.constant 0 : i32
    return %c0_i32, %c0_i32_0 : i32, i32
  }
  func.func @transform_5(%arg0: i32) -> (i32, i32) {
    %c0_i32 = arith.constant 0 : i32
    %c0_i32_0 = arith.constant 0 : i32
    %c0_i32_1 = arith.constant 0 : i32
    return %c0_i32, %c0_i32_0 : i32, i32
  }
  func.func @transform_6(%arg0: i32) -> (i32, i32) {
    %c0_i32 = arith.constant 0 : i32
    %c0_i32_0 = arith.constant 0 : i32
    %c0_i32_1 = arith.constant 0 : i32
    return %c0_i32, %c0_i32_0 : i32, i32
  }
  func.func @transform_7(%arg0: i32) -> (i32, i32) {
    %c0_i32 = arith.constant 0 : i32
    %c0_i32_0 = arith.constant 0 : i32
    %c0_i32_1 = arith.constant 0 : i32
    return %c0_i32, %c0_i32_0 : i32, i32
  }
  func.func @transform_8(%arg0: i32) -> (i32, i32) {
    %c0_i32 = arith.constant 0 : i32
    %c0_i32_0 = arith.constant 0 : i32
    return %arg0, %c0_i32 : i32, i32
  }
  func.func @transform_9(%arg0: i32) -> (i32, i32) {
    %c0_i32 = arith.constant 0 : i32
    %c0_i32_0 = arith.constant 0 : i32
    return %arg0, %c0_i32 : i32, i32
  }
}

</mosaic_0001>

<llo_original>
// kernel: tpu_custom_call.1
$region0: #{tpu_custom_call.1}
  #allocation0 [shape = 'u32[]', space=smem, size = 0x4, offset = 0x4, fixed_abs, tag = 'smem constant byte address 0x4 - core index']
  #allocation1 [shape = 'u32[144,128]{1,0:T(1,128)}', space=vmem, size = 0x12000, scoped, tag = 'internal scratch']
  %s0 = inlined_call_operand.hbm [shape: f32[8,64], index: 0, kind: input, shape index: {}]
  %s1 = inlined_call_operand.hbm [shape: f32[8,64], index: 1, kind: input, shape index: {}]
  %s2 = inlined_call_operand.hbm [shape: f32[64,128], index: 2, kind: input, shape index: {}]
  %s3 = inlined_call_operand.hbm [shape: f32[64,128], index: 3, kind: input, shape index: {}]
  %s4 = inlined_call_operand.hbm [shape: f32[64,128], index: 4, kind: input, shape index: {}]
  %s5 = inlined_call_operand.vmem [shape: f32[1,128], index: 5, kind: input, shape index: {}]
  %s6 = inlined_call_operand.hbm [shape: f32[128,128], index: 6, kind: input, shape index: {}]
  %s7 = inlined_call_operand.vmem [shape: f32[1,128], index: 7, kind: input, shape index: {}]
  %s8 = inlined_call_operand.hbm [shape: f32[8,128], index: 8, kind: output, shape index: {0}]
  %s9 = inlined_call_operand.hbm [shape: f32[8,128], index: 9, kind: output, shape index: {1}]
  %10 = xla_tuple %s8, %s9
  %s11 = sld [smem:[#allocation0]]
  $region74: #{tpu_custom_call.1} parent=0
    _
  %s13 = ssub.s32 1, %s11
  %s14 = scalar_select 0, %s13, %s11
  $region1: #{tpu_custom_call.1} parent=0
    #allocation2 [shape = 'u8[4096]{0}', space=vmem, size = 0x1000, scoped, tag = 'input window, operand 0, single buffered']
    #allocation3 [shape = 's32[1]{0}', space=sflag, size = 0x4, scoped, tag = 'scoped memory for tpu_custom_call.1']
    #allocation4 [shape = 's32[1]{0}', space=sflag, size = 0x4, scoped, tag = 'scoped memory for tpu_custom_call.1']
    #allocation5 [shape = 'u8[4096]{0}', space=vmem, size = 0x1000, scoped, tag = 'input window, operand 1, single buffered']
    #allocation6 [shape = 's32[1]{0}', space=sflag, size = 0x4, scoped, tag = 'scoped memory for tpu_custom_call.1']
    #allocation7 [shape = 'u8[32768]{0}', space=vmem, size = 0x8000, scoped, tag = 'input window, operand 2, single buffered']
    #allocation8 [shape = 'u8[32768]{0}', space=vmem, size = 0x8000, scoped, tag = 'input window, operand 3, single buffered']
    #allocation9 [shape = 's32[1]{0}', space=sflag, size = 0x4, scoped, tag = 'scoped memory for tpu_custom_call.1']
    #allocation10 [shape = 'u8[32768]{0}', space=vmem, size = 0x8000, scoped, tag = 'input window, operand 4, single buffered']
    #allocation11 [shape = 'u8[65536]{0}', space=vmem, size = 0x10000, scoped, tag = 'input window, operand 6, single buffered']
    #allocation12 [shape = 's32[1]{0}', space=sflag, size = 0x4, scoped, tag = 'scoped memory for tpu_custom_call.1']
    #allocation13 [shape = 'u8[4096]{0}', space=vmem, size = 0x1000, scoped, tag = 'output window, operand 0, single buffered']
    #allocation14 [shape = 'u8[4096]{0}', space=vmem, size = 0x1000, scoped, tag = 'output window, operand 1, single buffered']
    #allocation15 [shape = 's32[1]{0}', space=sflag, size = 0x4, scoped, tag = 'scoped memory for tpu_custom_call.1']
    %15 = vsyncpa [#allocation3], 0
    %16 = vsyncpa [#allocation6], 0
    %17 = vsyncpa [#allocation9], 0
    %18 = vsyncpa [#allocation12], 0
    %19 = vsyncpa [#allocation4], 0
    %20 = vsyncpa [#allocation15], 0
    // Predicated region
    $region2: #{tpu_custom_call.1} parent=1 // pred_check
      _
    $region3: #{tpu_custom_call.1} parent=1 // pred_check_branch
      %22 = sbr.rel (0) target = $region5
    $region4: #{tpu_custom_call.1} parent=1 // pred_region
      %s24 = ssub.s32 128, 128
      %25 = vsyncadd [#allocation3], %s24
      %s27 = sshll.u32 [#allocation2], 4
      %s28 = int_to_ptr.vmem [resolvable:$true] %s27
      %30 = dma.hbm_to_vmem [thread:$0]  %s0, 128, %s28, [#allocation3]
    $region5: #{tpu_custom_call.1} parent=1 // pred_fallthru
      _
    // Predicated region
    $region6: #{tpu_custom_call.1} parent=1 // pred_check
      _
    $region7: #{tpu_custom_call.1} parent=1 // pred_check_branch
      %32 = sbr.rel (0) target = $region9
    $region8: #{tpu_custom_call.1} parent=1 // pred_region
      %s34 = ssub.s32 128, 128
      %35 = vsyncadd [#allocation6], %s34
      %s37 = sshll.u32 [#allocation5], 4
      %s38 = int_to_ptr.vmem [resolvable:$true] %s37
      %40 = dma.hbm_to_vmem [thread:$0]  %s1, 128, %s38, [#allocation6]
    $region9: #{tpu_custom_call.1} parent=1 // pred_fallthru
      _
    // Predicated region
    $region10: #{tpu_custom_call.1} parent=1 // pred_check
      _
    $region11: #{tpu_custom_call.1} parent=1 // pred_check_branch
      %42 = sbr.rel (0) target = $region13
    $region12: #{tpu_custom_call.1} parent=1 // pred_region
      %s44 = ssub.s32 1024, 1024
      %45 = vsyncadd [#allocation6], %s44
      %s46 = sshll.u32 [#allocation7], 4
      %s47 = int_to_ptr.vmem [resolvable:$true] %s46
      %52 = dma.hbm_to_vmem [thread:$0]  %s2, 1024, %s47, [#allocation6], 128, 128, 8
    $region13: #{tpu_custom_call.1} parent=1 // pred_fallthru
      _
    // Predicated region
    $region14: #{tpu_custom_call.1} parent=1 // pred_check
      _
    $region15: #{tpu_custom_call.1} parent=1 // pred_check_branch
      %54 = sbr.rel (0) target = $region17
    $region16: #{tpu_custom_call.1} parent=1 // pred_region
      %s56 = ssub.s32 1024, 1024
      %57 = vsyncadd [#allocation9], %s56
      %s58 = sshll.u32 [#allocation8], 4
      %s59 = int_to_ptr.vmem [resolvable:$true] %s58
      %64 = dma.hbm_to_vmem [thread:$0]  %s3, 1024, %s59, [#allocation9], 128, 128, 8
    $region17: #{tpu_custom_call.1} parent=1 // pred_fallthru
      _
    // Predicated region
    $region18: #{tpu_custom_call.1} parent=1 // pred_check
      _
    $region19: #{tpu_custom_call.1} parent=1 // pred_check_branch
      %66 = sbr.rel (0) target = $region21
    $region20: #{tpu_custom_call.1} parent=1 // pred_region
      %s68 = ssub.s32 1024, 1024
      %69 = vsyncadd [#allocation9], %s68
      %s70 = sshll.u32 [#allocation10], 4
      %s71 = int_to_ptr.vmem [resolvable:$true] %s70
      %76 = dma.hbm_to_vmem [thread:$0]  %s4, 1024, %s71, [#allocation9], 128, 128, 8
    $region21: #{tpu_custom_call.1} parent=1 // pred_fallthru
      _
    // Predicated region
    $region22: #{tpu_custom_call.1} parent=1 // pred_check
      _
    $region23: #{tpu_custom_call.1} parent=1 // pred_check_branch
      %78 = sbr.rel (0) target = $region25
    $region24: #{tpu_custom_call.1} parent=1 // pred_region
      _
    $region25: #{tpu_custom_call.1} parent=1 // pred_fallthru
      _
    // Predicated region
    $region26: #{tpu_custom_call.1} parent=1 // pred_check
      _
    $region27: #{tpu_custom_call.1} parent=1 // pred_check_branch
      %80 = sbr.rel (0) target = $region29
    $region28: #{tpu_custom_call.1} parent=1 // pred_region
      %s82 = ssub.s32 2048, 2048
      %83 = vsyncadd [#allocation12], %s82
      %s84 = sshll.u32 [#allocation11], 4
      %s85 = int_to_ptr.vmem [resolvable:$true] %s84
      %90 = dma.hbm_to_vmem [thread:$0]  %s6, 2048, %s85, [#allocation12], 128, 128, 8
    $region29: #{tpu_custom_call.1} parent=1 // pred_fallthru
      _
    // Predicated region
    $region30: #{tpu_custom_call.1} parent=1 // pred_check
      _
    $region31: #{tpu_custom_call.1} parent=1 // pred_check_branch
      %92 = sbr.rel (0) target = $region33
    $region32: #{tpu_custom_call.1} parent=1 // pred_region
      _
    $region33: #{tpu_custom_call.1} parent=1 // pred_fallthru
      _
    // Predicated region
    $region34: #{tpu_custom_call.1} parent=1 // pred_check
      _
    $region35: #{tpu_custom_call.1} parent=1 // pred_check_branch
      %94 = sbr.rel (0) target = $region37
    $region36: #{tpu_custom_call.1} parent=1 // pred_region
      %95 = dma.done [#allocation3], 128
    $region37: #{tpu_custom_call.1} parent=1 // pred_fallthru
      _
    // Predicated region
    $region38: #{tpu_custom_call.1} parent=1 // pred_check
      _
    $region39: #{tpu_custom_call.1} parent=1 // pred_check_branch
      %97 = sbr.rel (0) target = $region41
    $region40: #{tpu_custom_call.1} parent=1 // pred_region
      %98 = dma.done [#allocation6], 128
    $region41: #{tpu_custom_call.1} parent=1 // pred_fallthru
      _
    // Predicated region
    $region42: #{tpu_custom_call.1} parent=1 // pred_check
      _
    $region43: #{tpu_custom_call.1} parent=1 // pred_check_branch
      %100 = sbr.rel (0) target = $region45
    $region44: #{tpu_custom_call.1} parent=1 // pred_region
      %101 = dma.done [#allocation6], 1024
    $region45: #{tpu_custom_call.1} parent=1 // pred_fallthru
      _
    // Predicated region
    $region46: #{tpu_custom_call.1} parent=1 // pred_check
      _
    $region47: #{tpu_custom_call.1} parent=1 // pred_check_branch
      %103 = sbr.rel (0) target = $region49
    $region48: #{tpu_custom_call.1} parent=1 // pred_region
      %104 = dma.done [#allocation9], 1024
    $region49: #{tpu_custom_call.1} parent=1 // pred_fallthru
      _
    // Predicated region
    $region50: #{tpu_custom_call.1} parent=1 // pred_check
      _
    $region51: #{tpu_custom_call.1} parent=1 // pred_check_branch
      %106 = sbr.rel (0) target = $region53
    $region52: #{tpu_custom_call.1} parent=1 // pred_region
      %107 = dma.done [#allocation9], 1024
    $region53: #{tpu_custom_call.1} parent=1 // pred_fallthru
      _
    // Predicated region
    $region54: #{tpu_custom_call.1} parent=1 // pred_check
      _
    $region55: #{tpu_custom_call.1} parent=1 // pred_check_branch
      %109 = sbr.rel (0) target = $region57
    $region56: #{tpu_custom_call.1} parent=1 // pred_region
      %110 = dma.done [#allocation12], 2048
    $region57: #{tpu_custom_call.1} parent=1 // pred_fallthru
      _
    %v111 = vld [vmem:[#allocation2] sm:$0xff]
    %v112 = vld [vmem:[#allocation5] sm:$0xff]
    %v113 = vld [vmem:[#allocation8] sm:$0xff]
    %v114 = vld [vmem:[#allocation8 + $0x8] sm:$0xff]
    %v115 = vld [vmem:[#allocation8 + $0x10] sm:$0xff]
    %v116 = vld [vmem:[#allocation8 + $0x18] sm:$0xff]
    %v117 = vld [vmem:[#allocation8 + $0x20] sm:$0xff]
    %v118 = vld [vmem:[#allocation8 + $0x28] sm:$0xff]
    %v119 = vld [vmem:[#allocation8 + $0x30] sm:$0xff]
    %v120 = vld [vmem:[#allocation8 + $0x38] sm:$0xff]
    %v121 = vld [vmem:[#allocation10] sm:$0xff]
    %v122 = vld [vmem:[#allocation10 + $0x8] sm:$0xff]
    %v123 = vld [vmem:[#allocation10 + $0x10] sm:$0xff]
    %v124 = vld [vmem:[#allocation10 + $0x18] sm:$0xff]
    %v125 = vld [vmem:[#allocation10 + $0x20] sm:$0xff]
    %v126 = vld [vmem:[#allocation10 + $0x28] sm:$0xff]
    %v127 = vld [vmem:[#allocation10 + $0x30] sm:$0xff]
    %v128 = vld [vmem:[#allocation10 + $0x38] sm:$0xff]
    %vm129 = vcmask 523264
    %v131 = vsel %vm129, %v112, 0
    %133 = vmatprep.subr.mxu0 0.0
    %134 = vmatpush1.msra.mxu0 %v121
    %135 = vmatprep.subr.mxu0 0.0
    %136 = vmatpush1.msra.mxu0 %v122
    %137 = vmatprep.subr.mxu0 0.0
    %138 = vmatpush1.msra.mxu0 %v123
    %139 = vmatprep.subr.mxu0 0.0
    %140 = vmatpush1.msra.mxu0 %v124
    %141 = vmatprep.subr.mxu0 0.0
    %142 = vmatpush1.msra.mxu0 %v125
    %143 = vmatprep.subr.mxu0 0.0
    %144 = vmatpush1.msra.mxu0 %v126
    %145 = vmatprep.subr.mxu0 0.0
    %146 = vmatpush1.msra.mxu0 %v127
    %147 = vmatprep.subr.mxu0 0.0
    %148 = vmatpush1.msra.mxu0 %v128
    %149 = vmatprep.subr.mxu0 0.0
    %150 = vmatpush1.msra.mxu0 0.0
    %151 = vmatprep.subr.mxu0 0.0
    %152 = vmatpush1.msra.mxu0 0.0
    %153 = vmatprep.subr.mxu0 0.0
    %154 = vmatpush1.msra.mxu0 0.0
    %155 = vmatprep.subr.mxu0 0.0
    %156 = vmatpush1.msra.mxu0 0.0
    %157 = vmatprep.subr.mxu0 0.0
    %158 = vmatpush1.msra.mxu0 0.0
    %159 = vmatprep.subr.mxu0 0.0
    %160 = vmatpush1.msra.mxu0 0.0
    %161 = vmatprep.subr.mxu0 0.0
    %162 = vmatpush1.msra.mxu0 0.0
    %163 = vmatprep.subr.mxu0 0.0
    %164 = vmatpush1.msra.mxu0 0.0
    %165 = vmatprep.subr.mxu0 0.0
    %166 = vmatpush1.msra.mxu0 0.0
    %167 = vmatprep.subr.mxu0 0.0
    %168 = vmatpush1.msra.mxu0 0.0
    %169 = vmatprep.subr.mxu0 0.0
    %170 = vmatpush1.msra.mxu0 0.0
    %171 = vmatprep.subr.mxu0 0.0
    %172 = vmatpush1.msra.mxu0 0.0
    %173 = vmatprep.subr.mxu0 0.0
    %174 = vmatpush1.msra.mxu0 0.0
    %175 = vmatprep.subr.mxu0 0.0
    %176 = vmatpush1.msra.mxu0 0.0
    %177 = vmatprep.subr.mxu0 0.0
    %178 = vmatpush1.msra.mxu0 0.0
    %179 = vmatprep.subr.mxu0 0.0
    %180 = vmatpush1.msra.mxu0 0.0
    %181 = vmatprep.subr.mxu0 0.0
    %182 = vmatpush1.msra.mxu0 0.0
    %183 = vmatprep.subr.mxu0 0.0
    %184 = vmatpush1.msra.mxu0 0.0
    %185 = vmatprep.subr.mxu0 0.0
    %186 = vmatpush1.msra.mxu0 0.0
    %187 = vmatprep.subr.mxu0 0.0
    %188 = vmatpush1.msra.mxu0 0.0
    %189 = vmatprep.subr.mxu0 0.0
    %190 = vmatpush1.msra.mxu0 0.0
    %191 = vmatprep.subr.mxu0 0.0
    %192 = vmatpush1.msra.mxu0 0.0
    %193 = vmatprep.subr.mxu0 0.0
    %194 = vmatpush1.msra.mxu0 0.0
    %195 = vmatprep.subr.mxu0 0.0
    %196 = vmatpush1.msra.mxu0 0.0
    %197 = vmatprep.mubr.f32.mxu0 0.0
    %198 = vmatmul.mubr.f32.gmra.mrb[0].mxu0 %v131
    %v199 = vpop.f32.mrb[0].mxu0
    %v200 = vadd.f32 0.0, %v199
    %v201 = vpop.f32.mrb[0].mxu0
    %202 = vdwg.mxu0
    %v204 = vsel %vm129, %v111, 0
    %206 = vmatprep.subr.mxu0 0.0
    %207 = vmatpush1.msra.mxu0 %v113
    %208 = vmatprep.subr.mxu0 0.0
    %209 = vmatpush1.msra.mxu0 %v114
    %210 = vmatprep.subr.mxu0 0.0
    %211 = vmatpush1.msra.mxu0 %v115
    %212 = vmatprep.subr.mxu0 0.0
    %213 = vmatpush1.msra.mxu0 %v116
    %214 = vmatprep.subr.mxu0 0.0
    %215 = vmatpush1.msra.mxu0 %v117
    %216 = vmatprep.subr.mxu0 0.0
    %217 = vmatpush1.msra.mxu0 %v118
    %218 = vmatprep.subr.mxu0 0.0
    %219 = vmatpush1.msra.mxu0 %v119
    %220 = vmatprep.subr.mxu0 0.0
    %221 = vmatpush1.msra.mxu0 %v120
    %222 = vmatprep.subr.mxu0 0.0
    %223 = vmatpush1.msra.mxu0 0.0
    %224 = vmatprep.subr.mxu0 0.0
    %225 = vmatpush1.msra.mxu0 0.0
    %226 = vmatprep.subr.mxu0 0.0
    %227 = vmatpush1.msra.mxu0 0.0
    %228 = vmatprep.subr.mxu0 0.0
    %229 = vmatpush1.msra.mxu0 0.0
    %230 = vmatprep.subr.mxu0 0.0
    %231 = vmatpush1.msra.mxu0 0.0
    %232 = vmatprep.subr.mxu0 0.0
    %233 = vmatpush1.msra.mxu0 0.0
    %234 = vmatprep.subr.mxu0 0.0
    %235 = vmatpush1.msra.mxu0 0.0
    %236 = vmatprep.subr.mxu0 0.0
    %237 = vmatpush1.msra.mxu0 0.0
    %238 = vmatprep.subr.mxu0 0.0
    %239 = vmatpush1.msra.mxu0 0.0
    %240 = vmatprep.subr.mxu0 0.0
    %241 = vmatpush1.msra.mxu0 0.0
    %242 = vmatprep.subr.mxu0 0.0
    %243 = vmatpush1.msra.mxu0 0.0
    %244 = vmatprep.subr.mxu0 0.0
    %245 = vmatpush1.msra.mxu0 0.0
    %246 = vmatprep.subr.mxu0 0.0
    %247 = vmatpush1.msra.mxu0 0.0
    %248 = vmatprep.subr.mxu0 0.0
    %249 = vmatpush1.msra.mxu0 0.0
    %250 = vmatprep.subr.mxu0 0.0
    %251 = vmatpush1.msra.mxu0 0.0
    %252 = vmatprep.subr.mxu0 0.0
    %253 = vmatpush1.msra.mxu0 0.0
    %254 = vmatprep.subr.mxu0 0.0
    %255 = vmatpush1.msra.mxu0 0.0
    %256 = vmatprep.subr.mxu0 0.0
    %257 = vmatpush1.msra.mxu0 0.0
    %258 = vmatprep.subr.mxu0 0.0
    %259 = vmatpush1.msra.mxu0 0.0
    %260 = vmatprep.subr.mxu0 0.0
    %261 = vmatpush1.msra.mxu0 0.0
    %262 = vmatprep.subr.mxu0 0.0
    %263 = vmatpush1.msra.mxu0 0.0
    %264 = vmatprep.subr.mxu0 0.0
    %265 = vmatpush1.msra.mxu0 0.0
    %266 = vmatprep.subr.mxu0 0.0
    %267 = vmatpush1.msra.mxu0 0.0
    %268 = vmatprep.subr.mxu0 0.0
    %269 = vmatpush1.msra.mxu0 0.0
    %270 = vmatprep.mubr.f32.mxu0 0.0
    %271 = vmatmul.mubr.f32.gmra.mrb[0].mxu0 %v204
    %v272 = vpop.f32.mrb[0].mxu0
    %v273 = vadd.f32 %v200, %v272
    %v274 = vpop.f32.mrb[0].mxu0
    %275 = vdwg.mxu0
    %v276 = vld [vmem:[%s5] sm:$0x1]
    %v278 = vlaneseq
    %v279 = vshrl.u32 %v278, 7
    %v280 = vsub.s32 0, %v279
    %v281 = vrot.slane %v276, %v280
    %v283 = vadd.f32 %v273, %v281
    %v284 = vld [vmem:[#allocation7] sm:$0xff]
    %v285 = vld [vmem:[#allocation7 + $0x8] sm:$0xff]
    %v286 = vld [vmem:[#allocation7 + $0x10] sm:$0xff]
    %v287 = vld [vmem:[#allocation7 + $0x18] sm:$0xff]
    %v288 = vld [vmem:[#allocation7 + $0x20] sm:$0xff]
    %v289 = vld [vmem:[#allocation7 + $0x28] sm:$0xff]
    %v290 = vld [vmem:[#allocation7 + $0x30] sm:$0xff]
    %v291 = vld [vmem:[#allocation7 + $0x38] sm:$0xff]
    %292 = vmatprep.subr.mxu0 0.0
    %293 = vmatpush1.msra.mxu0 %v284
    %294 = vmatprep.subr.mxu0 0.0
    %295 = vmatpush1.msra.mxu0 %v285
    %296 = vmatprep.subr.mxu0 0.0
    %297 = vmatpush1.msra.mxu0 %v286
    %298 = vmatprep.subr.mxu0 0.0
    %299 = vmatpush1.msra.mxu0 %v287
    %300 = vmatprep.subr.mxu0 0.0
    %301 = vmatpush1.msra.mxu0 %v288
    %302 = vmatprep.subr.mxu0 0.0
    %303 = vmatpush1.msra.mxu0 %v289
    %304 = vmatprep.subr.mxu0 0.0
    %305 = vmatpush1.msra.mxu0 %v290
    %306 = vmatprep.subr.mxu0 0.0
    %307 = vmatpush1.msra.mxu0 %v291
    %308 = vmatprep.subr.mxu0 0.0
    %309 = vmatpush1.msra.mxu0 0.0
    %310 = vmatprep.subr.mxu0 0.0
    %311 = vmatpush1.msra.mxu0 0.0
    %312 = vmatprep.subr.mxu0 0.0
    %313 = vmatpush1.msra.mxu0 0.0
    %314 = vmatprep.subr.mxu0 0.0
    %315 = vmatpush1.msra.mxu0 0.0
    %316 = vmatprep.subr.mxu0 0.0
    %317 = vmatpush1.msra.mxu0 0.0
    %318 = vmatprep.subr.mxu0 0.0
    %319 = vmatpush1.msra.mxu0 0.0
    %320 = vmatprep.subr.mxu0 0.0
    %321 = vmatpush1.msra.mxu0 0.0
    %322 = vmatprep.subr.mxu0 0.0
    %323 = vmatpush1.msra.mxu0 0.0
    %324 = vmatprep.subr.mxu0 0.0
    %325 = vmatpush1.msra.mxu0 0.0
    %326 = vmatprep.subr.mxu0 0.0
    %327 = vmatpush1.msra.mxu0 0.0
    %328 = vmatprep.subr.mxu0 0.0
    %329 = vmatpush1.msra.mxu0 0.0
    %330 = vmatprep.subr.mxu0 0.0
    %331 = vmatpush1.msra.mxu0 0.0
    %332 = vmatprep.subr.mxu0 0.0
    %333 = vmatpush1.msra.mxu0 0.0
    %334 = vmatprep.subr.mxu0 0.0
    %335 = vmatpush1.msra.mxu0 0.0
    %336 = vmatprep.subr.mxu0 0.0
    %337 = vmatpush1.msra.mxu0 0.0
    %338 = vmatprep.subr.mxu0 0.0
    %339 = vmatpush1.msra.mxu0 0.0
    %340 = vmatprep.subr.mxu0 0.0
    %341 = vmatpush1.msra.mxu0 0.0
    %342 = vmatprep.subr.mxu0 0.0
    %343 = vmatpush1.msra.mxu0 0.0
    %344 = vmatprep.subr.mxu0 0.0
    %345 = vmatpush1.msra.mxu0 0.0
    %346 = vmatprep.subr.mxu0 0.0
    %347 = vmatpush1.msra.mxu0 0.0
    %348 = vmatprep.subr.mxu0 0.0
    %349 = vmatpush1.msra.mxu0 0.0
    %350 = vmatprep.subr.mxu0 0.0
    %351 = vmatpush1.msra.mxu0 0.0
    %352 = vmatprep.subr.mxu0 0.0
    %353 = vmatpush1.msra.mxu0 0.0
    %354 = vmatprep.subr.mxu0 0.0
    %355 = vmatpush1.msra.mxu0 0.0
    %356 = vmatprep.mubr.f32.mxu0 0.0
    %357 = vmatmul.mubr.f32.gmra.mrb[0].mxu0 %v204
    %v358 = vpop.f32.mrb[0].mxu0
    %v359 = vadd.f32 %v283, %v358
    %v360 = vpop.f32.mrb[0].mxu0
    %361 = vdwg.mxu0
    %v362 = vld [vmem:[#allocation11] sm:$0xff]
    %v363 = vld [vmem:[#allocation11 + $0x8] sm:$0xff]
    %v364 = vld [vmem:[#allocation11 + $0x10] sm:$0xff]
    %v365 = vld [vmem:[#allocation11 + $0x18] sm:$0xff]
    %v366 = vld [vmem:[#allocation11 + $0x20] sm:$0xff]
    %v367 = vld [vmem:[#allocation11 + $0x28] sm:$0xff]
    %v368 = vld [vmem:[#allocation11 + $0x30] sm:$0xff]
    %v369 = vld [vmem:[#allocation11 + $0x38] sm:$0xff]
    %v370 = vld [vmem:[#allocation11 + $0x40] sm:$0xff]
    %v371 = vld [vmem:[#allocation11 + $0x48] sm:$0xff]
    %v372 = vld [vmem:[#allocation11 + $0x50] sm:$0xff]
    %v373 = vld [vmem:[#allocation11 + $0x58] sm:$0xff]
    %v374 = vld [vmem:[#allocation11 + $0x60] sm:$0xff]
    %v375 = vld [vmem:[#allocation11 + $0x68] sm:$0xff]
    %v376 = vld [vmem:[#allocation11 + $0x70] sm:$0xff]
    %v377 = vld [vmem:[#allocation11 + $0x78] sm:$0xff]
    %v378 = vld [vmem:[%s7] sm:$0x1]
    %v380 = vlaneseq
    %v381 = vshrl.u32 %v380, 7
    %v382 = vsub.s32 0, %v381
    %v383 = vrot.slane %v378, %v382
    %385 = vmatprep.subr.mxu0 0.0
    %386 = vmatpush1.msra.mxu0 %v362
    %387 = vmatprep.subr.mxu0 0.0
    %388 = vmatpush1.msra.mxu0 %v363
    %389 = vmatprep.subr.mxu0 0.0
    %390 = vmatpush1.msra.mxu0 %v364
    %391 = vmatprep.subr.mxu0 0.0
    %392 = vmatpush1.msra.mxu0 %v365
    %393 = vmatprep.subr.mxu0 0.0
    %394 = vmatpush1.msra.mxu0 %v366
    %395 = vmatprep.subr.mxu0 0.0
    %396 = vmatpush1.msra.mxu0 %v367
    %397 = vmatprep.subr.mxu0 0.0
    %398 = vmatpush1.msra.mxu0 %v368
    %399 = vmatprep.subr.mxu0 0.0
    %400 = vmatpush1.msra.mxu0 %v369
    %401 = vmatprep.subr.mxu0 0.0
    %402 = vmatpush1.msra.mxu0 %v370
    %403 = vmatprep.subr.mxu0 0.0
    %404 = vmatpush1.msra.mxu0 %v371
    %405 = vmatprep.subr.mxu0 0.0
    %406 = vmatpush1.msra.mxu0 %v372
    %407 = vmatprep.subr.mxu0 0.0
    %408 = vmatpush1.msra.mxu0 %v373
    %409 = vmatprep.subr.mxu0 0.0
    %410 = vmatpush1.msra.mxu0 %v374
    %411 = vmatprep.subr.mxu0 0.0
    %412 = vmatpush1.msra.mxu0 %v375
    %413 = vmatprep.subr.mxu0 0.0
    %414 = vmatpush1.msra.mxu0 %v376
    %415 = vmatprep.subr.mxu0 0.0
    %416 = vmatpush1.msra.mxu0 %v377
    %417 = vmatprep.subr.mxu0 0.0
    %418 = vmatpush1.msra.mxu0 0.0
    %419 = vmatprep.subr.mxu0 0.0
    %420 = vmatpush1.msra.mxu0 0.0
    %421 = vmatprep.subr.mxu0 0.0
    %422 = vmatpush1.msra.mxu0 0.0
    %423 = vmatprep.subr.mxu0 0.0
    %424 = vmatpush1.msra.mxu0 0.0
    %425 = vmatprep.subr.mxu0 0.0
    %426 = vmatpush1.msra.mxu0 0.0
    %427 = vmatprep.subr.mxu0 0.0
    %428 = vmatpush1.msra.mxu0 0.0
    %429 = vmatprep.subr.mxu0 0.0
    %430 = vmatpush1.msra.mxu0 0.0
    %431 = vmatprep.subr.mxu0 0.0
    %432 = vmatpush1.msra.mxu0 0.0
    %433 = vmatprep.subr.mxu0 0.0
    %434 = vmatpush1.msra.mxu0 0.0
    %435 = vmatprep.subr.mxu0 0.0
    %436 = vmatpush1.msra.mxu0 0.0
    %437 = vmatprep.subr.mxu0 0.0
    %438 = vmatpush1.msra.mxu0 0.0
    %439 = vmatprep.subr.mxu0 0.0
    %440 = vmatpush1.msra.mxu0 0.0
    %441 = vmatprep.subr.mxu0 0.0
    %442 = vmatpush1.msra.mxu0 0.0
    %443 = vmatprep.subr.mxu0 0.0
    %444 = vmatpush1.msra.mxu0 0.0
    %445 = vmatprep.subr.mxu0 0.0
    %446 = vmatpush1.msra.mxu0 0.0
    %447 = vmatprep.subr.mxu0 0.0
    %448 = vmatpush1.msra.mxu0 0.0
    %449 = vmatprep.mubr.f32.mxu0 0.0
    %450 = vmatmul.mubr.f32.gmra.mrb[0].mxu0 %v359
    %v451 = vpop.f32.mrb[0].mxu0
    %v452 = vadd.f32 %v383, %v451
    %v453 = vpop.f32.mrb[0].mxu0
    %454 = vdwg.mxu0
    %455 = vst [vmem:[#allocation13] sm:$0xff] %v452
    %456 = vst [vmem:[#allocation14] sm:$0xff] %v359
    // Predicated region
    $region58: #{tpu_custom_call.1} parent=1 // pred_check
      _
    $region59: #{tpu_custom_call.1} parent=1 // pred_check_branch
      %458 = sbr.rel (0) target = $region61
    $region60: #{tpu_custom_call.1} parent=1 // pred_region
      %s460 = ssub.s32 128, 128
      %461 = vsyncadd [#allocation4], %s460
      %s463 = sshll.u32 [#allocation13], 4
      %s464 = int_to_ptr.vmem [resolvable:$true] %s463
      %466 = dma.vmem_to_hbm [thread:$0]  %s464, 128, %s8, [#allocation4]
    $region61: #{tpu_custom_call.1} parent=1 // pred_fallthru
      _
    // Predicated region
    $region62: #{tpu_custom_call.1} parent=1 // pred_check
      _
    $region63: #{tpu_custom_call.1} parent=1 // pred_check_branch
      %468 = sbr.rel (0) target = $region65
    $region64: #{tpu_custom_call.1} parent=1 // pred_region
      %s470 = ssub.s32 128, 128
      %471 = vsyncadd [#allocation15], %s470
      %s473 = sshll.u32 [#allocation14], 4
      %s474 = int_to_ptr.vmem [resolvable:$true] %s473
      %476 = dma.vmem_to_hbm [thread:$0]  %s474, 128, %s9, [#allocation15]
    $region65: #{tpu_custom_call.1} parent=1 // pred_fallthru
      _
    // Predicated region
    $region66: #{tpu_custom_call.1} parent=1 // pred_check
      _
    $region67: #{tpu_custom_call.1} parent=1 // pred_check_branch
      %478 = sbr.rel (0) target = $region69
    $region68: #{tpu_custom_call.1} parent=1 // pred_region
      %479 = dma.done [#allocation4], 128
    $region69: #{tpu_custom_call.1} parent=1 // pred_fallthru
      _
    // Predicated region
    $region70: #{tpu_custom_call.1} parent=1 // pred_check
      _
    $region71: #{tpu_custom_call.1} parent=1 // pred_check_branch
      %481 = sbr.rel (0) target = $region73
    $region72: #{tpu_custom_call.1} parent=1 // pred_region
      %482 = dma.done [#allocation15], 128
    $region73: #{tpu_custom_call.1} parent=1 // pred_fallthru
      _
    %483 = vsyncpa [#allocation3], 1
    %484 = vsyncpa [#allocation6], 1
    %485 = vsyncpa [#allocation9], 1
    %486 = vsyncpa [#allocation12], 1
    %487 = vsyncpa [#allocation4], 1
    %488 = vsyncpa [#allocation15], 1

// kernel: tpu_custom_call.1
$region0: #{tpu_custom_call.1}
  #allocation0 [shape = 'u32[]', space=smem, size = 0x4, offset = 0x4, fixed_abs, tag = 'smem constant byte address 0x4 - core index']
  #allocation1 [shape = 'u32[144,128]{1,0:T(1,128)}', space=vmem, size = 0x12000, scoped, tag = 'internal scratch']
  %s0 = inlined_call_operand.hbm [shape: f32[8,64], index: 0, kind: input, shape index: {}]
  %s1 = inlined_call_operand.hbm [shape: f32[8,64], index: 1, kind: input, shape index: {}]
  %s2 = inlined_call_operand.hbm [shape: f32[64,128], index: 2, kind: input, shape index: {}]
  %s3 = inlined_call_operand.hbm [shape: f32[64,128], index: 3, kind: input, shape index: {}]
  %s4 = inlined_call_operand.hbm [shape: f32[64,128], index: 4, kind: input, shape index: {}]
  %s5 = inlined_call_operand.vmem [shape: f32[1,128], index: 5, kind: input, shape index: {}]
  %s6 = inlined_call_operand.hbm [shape: f32[128,128], index: 6, kind: input, shape index: {}]
  %s7 = inlined_call_operand.vmem [shape: f32[1,128], index: 7, kind: input, shape index: {}]
  %s8 = inlined_call_operand.hbm [shape: f32[8,128], index: 8, kind: output, shape index: {0}]
  %s9 = inlined_call_operand.hbm [shape: f32[8,128], index: 9, kind: output, shape index: {1}]
  %10 = xla_tuple %s8, %s9
  %s11 = sld [smem:[#allocation0]]
  $region74: #{tpu_custom_call.1} parent=0
    _
  %s13 = ssub.s32 1, %s11
  %s14 = scalar_select 0, %s13, %s11
  $region1: #{tpu_custom_call.1} parent=0
    #allocation2 [shape = 'u8[4096]{0}', space=vmem, size = 0x1000, scoped, tag = 'input window, operand 0, single buffered']
    #allocation3 [shape = 's32[1]{0}', space=sflag, size = 0x4, scoped, tag = 'scoped memory for tpu_custom_call.1']
    #allocation4 [shape = 's32[1]{0}', space=sflag, size = 0x4, scoped, tag = 'scoped memory for tpu_custom_call.1']
    #allocation5 [shape = 'u8[4096]{0}', space=vmem, size = 0x1000, scoped, tag = 'input window, operand 1, single buffered']
    #allocation6 [shape = 's32[1]{0}', space=sflag, size = 0x4, scoped, tag = 'scoped memory for tpu_custom_call.1']
    #allocation7 [shape = 'u8[32768]{0}', space=vmem, size = 0x8000, scoped, tag = 'input window, operand 2, single buffered']
    #allocation8 [shape = 'u8[32768]{0}', space=vmem, size = 0x8000, scoped, tag = 'input window, operand 3, single buffered']
    #allocation9 [shape = 's32[1]{0}', space=sflag, size = 0x4, scoped, tag = 'scoped memory for tpu_custom_call.1']
    #allocation10 [shape = 'u8[32768]{0}', space=vmem, size = 0x8000, scoped, tag = 'input window, operand 4, single buffered']
    #allocation11 [shape = 'u8[65536]{0}', space=vmem, size = 0x10000, scoped, tag = 'input window, operand 6, single buffered']
    #allocation12 [shape = 's32[1]{0}', space=sflag, size = 0x4, scoped, tag = 'scoped memory for tpu_custom_call.1']
    #allocation13 [shape = 'u8[4096]{0}', space=vmem, size = 0x1000, scoped, tag = 'output window, operand 0, single buffered']
    #allocation14 [shape = 'u8[4096]{0}', space=vmem, size = 0x1000, scoped, tag = 'output window, operand 1, single buffered']
    #allocation15 [shape = 's32[1]{0}', space=sflag, size = 0x4, scoped, tag = 'scoped memory for tpu_custom_call.1']
    %15 = vsyncpa [#allocation3], 0
    %16 = vsyncpa [#allocation6], 0
    %17 = vsyncpa [#allocation9], 0
    %18 = vsyncpa [#allocation12], 0
    %19 = vsyncpa [#allocation4], 0
    %20 = vsyncpa [#allocation15], 0
    // Predicated region
    $region2: #{tpu_custom_call.1} parent=1 // pred_check
      _
    $region3: #{tpu_custom_call.1} parent=1 // pred_check_branch
      %22 = sbr.rel (0) target = $region5
    $region4: #{tpu_custom_call.1} parent=1 // pred_region
      %s24 = ssub.s32 128, 128
      %25 = vsyncadd [#allocation3], %s24
      %s27 = sshll.u32 [#allocation2], 4
      %s28 = int_to_ptr.vmem [resolvable:$true] %s27
      %30 = dma.hbm_to_vmem [thread:$0]  %s0, 128, %s28, [#allocation3]
    $region5: #{tpu_custom_call.1} parent=1 // pred_fallthru
      _
    // Predicated region
    $region6: #{tpu_custom_call.1} parent=1 // pred_check
      _
    $region7: #{tpu_custom_call.1} parent=1 // pred_check_branch
      %32 = sbr.rel (0) target = $region9
    $region8: #{tpu_custom_call.1} parent=1 // pred_region
      %s34 = ssub.s32 128, 128
      %35 = vsyncadd [#allocation6], %s34
      %s37 = sshll.u32 [#allocation5], 4
      %s38 = int_to_ptr.vmem [resolvable:$true] %s37
      %40 = dma.hbm_to_vmem [thread:$0]  %s1, 128, %s38, [#allocation6]
    $region9: #{tpu_custom_call.1} parent=1 // pred_fallthru
      _
    // Predicated region
    $region10: #{tpu_custom_call.1} parent=1 // pred_check
      _
    $region11: #{tpu_custom_call.1} parent=1 // pred_check_branch
      %42 = sbr.rel (0) target = $region13
    $region12: #{tpu_custom_call.1} parent=1 // pred_region
      %s44 = ssub.s32 1024, 1024
      %45 = vsyncadd [#allocation6], %s44
      %s46 = sshll.u32 [#allocation7], 4
      %s47 = int_to_ptr.vmem [resolvable:$true] %s46
      %52 = dma.hbm_to_vmem [thread:$0]  %s2, 1024, %s47, [#allocation6], 128, 128, 8
    $region13: #{tpu_custom_call.1} parent=1 // pred_fallthru
      _
    // Predicated region
    $region14: #{tpu_custom_call.1} parent=1 // pred_check
      _
    $region15: #{tpu_custom_call.1} parent=1 // pred_check_branch
      %54 = sbr.rel (0) target = $region17
    $region16: #{tpu_custom_call.1} parent=1 // pred_region
      %s56 = ssub.s32 1024, 1024
      %57 = vsyncadd [#allocation9], %s56
      %s58 = sshll.u32 [#allocation8], 4
      %s59 = int_to_ptr.vmem [resolvable:$true] %s58
      %64 = dma.hbm_to_vmem [thread:$0]  %s3, 1024, %s59, [#allocation9], 128, 128, 8
    $region17: #{tpu_custom_call.1} parent=1 // pred_fallthru
      _
    // Predicated region
    $region18: #{tpu_custom_call.1} parent=1 // pred_check
      _
    $region19: #{tpu_custom_call.1} parent=1 // pred_check_branch
      %66 = sbr.rel (0) target = $region21
    $region20: #{tpu_custom_call.1} parent=1 // pred_region
      %s68 = ssub.s32 1024, 1024
      %69 = vsyncadd [#allocation9], %s68
      %s70 = sshll.u32 [#allocation10], 4
      %s71 = int_to_ptr.vmem [resolvable:$true] %s70
      %76 = dma.hbm_to_vmem [thread:$0]  %s4, 1024, %s71, [#allocation9], 128, 128, 8
    $region21: #{tpu_custom_call.1} parent=1 // pred_fallthru
      _
    // Predicated region
    $region22: #{tpu_custom_call.1} parent=1 // pred_check
      _
    $region23: #{tpu_custom_call.1} parent=1 // pred_check_branch
      %78 = sbr.rel (0) target = $region25
    $region24: #{tpu_custom_call.1} parent=1 // pred_region
      _
    $region25: #{tpu_custom_call.1} parent=1 // pred_fallthru
      _
    // Predicated region
    $region26: #{tpu_custom_call.1} parent=1 // pred_check
      _
    $region27: #{tpu_custom_call.1} parent=1 // pred_check_branch
      %80 = sbr.rel (0) target = $region29
    $region28: #{tpu_custom_call.1} parent=1 // pred_region
      %s82 = ssub.s32 2048, 2048
      %83 = vsyncadd [#allocation12], %s82
      %s84 = sshll.u32 [#allocation11], 4
      %s85 = int_to_ptr.vmem [resolvable:$true] %s84
      %90 = dma.hbm_to_vmem [thread:$0]  %s6, 2048, %s85, [#allocation12], 128, 128, 8
    $region29: #{tpu_custom_call.1} parent=1 // pred_fallthru
      _
    // Predicated region
    $region30: #{tpu_custom_call.1} parent=1 // pred_check
      _
    $region31: #{tpu_custom_call.1} parent=1 // pred_check_branch
      %92 = sbr.rel (0) target = $region33
    $region32: #{tpu_custom_call.1} parent=1 // pred_region
      _
    $region33: #{tpu_custom_call.1} parent=1 // pred_fallthru
      _
    // Predicated region
    $region34: #{tpu_custom_call.1} parent=1 // pred_check
      _
    $region35: #{tpu_custom_call.1} parent=1 // pred_check_branch
      %94 = sbr.rel (0) target = $region37
    $region36: #{tpu_custom_call.1} parent=1 // pred_region
      %95 = dma.done [#allocation3], 128
    $region37: #{tpu_custom_call.1} parent=1 // pred_fallthru
      _
    // Predicated region
    $region38: #{tpu_custom_call.1} parent=1 // pred_check
      _
    $region39: #{tpu_custom_call.1} parent=1 // pred_check_branch
      %97 = sbr.rel (0) target = $region41
    $region40: #{tpu_custom_call.1} parent=1 // pred_region
      %98 = dma.done [#allocation6], 128
    $region41: #{tpu_custom_call.1} parent=1 // pred_fallthru
      _
    // Predicated region
    $region42: #{tpu_custom_call.1} parent=1 // pred_check
      _
    $region43: #{tpu_custom_call.1} parent=1 // pred_check_branch
      %100 = sbr.rel (0) target = $region45
    $region44: #{tpu_custom_call.1} parent=1 // pred_region
      %101 = dma.done [#allocation6], 1024
    $region45: #{tpu_custom_call.1} parent=1 // pred_fallthru
      _
    // Predicated region
    $region46: #{tpu_custom_call.1} parent=1 // pred_check
      _
    $region47: #{tpu_custom_call.1} parent=1 // pred_check_branch
      %103 = sbr.rel (0) target = $region49
    $region48: #{tpu_custom_call.1} parent=1 // pred_region
      %104 = dma.done [#allocation9], 1024
    $region49: #{tpu_custom_call.1} parent=1 // pred_fallthru
      _
    // Predicated region
    $region50: #{tpu_custom_call.1} parent=1 // pred_check
      _
    $region51: #{tpu_custom_call.1} parent=1 // pred_check_branch
      %106 = sbr.rel (0) target = $region53
    $region52: #{tpu_custom_call.1} parent=1 // pred_region
      %107 = dma.done [#allocation9], 1024
    $region53: #{tpu_custom_call.1} parent=1 // pred_fallthru
      _
    // Predicated region
    $region54: #{tpu_custom_call.1} parent=1 // pred_check
      _
    $region55: #{tpu_custom_call.1} parent=1 // pred_check_branch
      %109 = sbr.rel (0) target = $region57
    $region56: #{tpu_custom_call.1} parent=1 // pred_region
      %110 = dma.done [#allocation12], 2048
    $region57: #{tpu_custom_call.1} parent=1 // pred_fallthru
      _
    %v111 = vld [vmem:[#allocation2] sm:$0xff]
    %v112 = vld [vmem:[#allocation5] sm:$0xff]
    %v113 = vld [vmem:[#allocation8] sm:$0xff]
    %v114 = vld [vmem:[#allocation8 + $0x8] sm:$0xff]
    %v115 = vld [vmem:[#allocation8 + $0x10] sm:$0xff]
    %v116 = vld [vmem:[#allocation8 + $0x18] sm:$0xff]
    %v117 = vld [vmem:[#allocation8 + $0x20] sm:$0xff]
    %v118 = vld [vmem:[#allocation8 + $0x28] sm:$0xff]
    %v119 = vld [vmem:[#allocation8 + $0x30] sm:$0xff]
    %v120 = vld [vmem:[#allocation8 + $0x38] sm:$0xff]
    %v121 = vld [vmem:[#allocation10] sm:$0xff]
    %v122 = vld [vmem:[#allocation10 + $0x8] sm:$0xff]
    %v123 = vld [vmem:[#allocation10 + $0x10] sm:$0xff]
    %v124 = vld [vmem:[#allocation10 + $0x18] sm:$0xff]
    %v125 = vld [vmem:[#allocation10 + $0x20] sm:$0xff]
    %v126 = vld [vmem:[#allocation10 + $0x28] sm:$0xff]
    %v127 = vld [vmem:[#allocation10 + $0x30] sm:$0xff]
    %v128 = vld [vmem:[#allocation10 + $0x38] sm:$0xff]
    %vm129 = vcmask 523264
    %v131 = vsel %vm129, %v112, 0
    %133 = vmatprep.subr.mxu0 0.0
    %134 = vmatpush1.msra.mxu0 %v121
    %135 = vmatprep.subr.mxu0 0.0
    %136 = vmatpush1.msra.mxu0 %v122
    %137 = vmatprep.subr.mxu0 0.0
    %138 = vmatpush1.msra.mxu0 %v123
    %139 = vmatprep.subr.mxu0 0.0
    %140 = vmatpush1.msra.mxu0 %v124
    %141 = vmatprep.subr.mxu0 0.0
    %142 = vmatpush1.msra.mxu0 %v125
    %143 = vmatprep.subr.mxu0 0.0
    %144 = vmatpush1.msra.mxu0 %v126
    %145 = vmatprep.subr.mxu0 0.0
    %146 = vmatpush1.msra.mxu0 %v127
    %147 = vmatprep.subr.mxu0 0.0
    %148 = vmatpush1.msra.mxu0 %v128
    %149 = vmatprep.subr.mxu0 0.0
    %150 = vmatpush1.msra.mxu0 0.0
    %151 = vmatprep.subr.mxu0 0.0
    %152 = vmatpush1.msra.mxu0 0.0
    %153 = vmatprep.subr.mxu0 0.0
    %154 = vmatpush1.msra.mxu0 0.0
    %155 = vmatprep.subr.mxu0 0.0
    %156 = vmatpush1.msra.mxu0 0.0
    %157 = vmatprep.subr.mxu0 0.0
    %158 = vmatpush1.msra.mxu0 0.0
    %159 = vmatprep.subr.mxu0 0.0
    %160 = vmatpush1.msra.mxu0 0.0
    %161 = vmatprep.subr.mxu0 0.0
    %162 = vmatpush1.msra.mxu0 0.0
    %163 = vmatprep.subr.mxu0 0.0
    %164 = vmatpush1.msra.mxu0 0.0
    %165 = vmatprep.subr.mxu0 0.0
    %166 = vmatpush1.msra.mxu0 0.0
    %167 = vmatprep.subr.mxu0 0.0
    %168 = vmatpush1.msra.mxu0 0.0
    %169 = vmatprep.subr.mxu0 0.0
    %170 = vmatpush1.msra.mxu0 0.0
    %171 = vmatprep.subr.mxu0 0.0
    %172 = vmatpush1.msra.mxu0 0.0
    %173 = vmatprep.subr.mxu0 0.0
    %174 = vmatpush1.msra.mxu0 0.0
    %175 = vmatprep.subr.mxu0 0.0
    %176 = vmatpush1.msra.mxu0 0.0
    %177 = vmatprep.subr.mxu0 0.0
    %178 = vmatpush1.msra.mxu0 0.0
    %179 = vmatprep.subr.mxu0 0.0
    %180 = vmatpush1.msra.mxu0 0.0
    %181 = vmatprep.subr.mxu0 0.0
    %182 = vmatpush1.msra.mxu0 0.0
    %183 = vmatprep.subr.mxu0 0.0
    %184 = vmatpush1.msra.mxu0 0.0
    %185 = vmatprep.subr.mxu0 0.0
    %186 = vmatpush1.msra.mxu0 0.0
    %187 = vmatprep.subr.mxu0 0.0
    %188 = vmatpush1.msra.mxu0 0.0
    %189 = vmatprep.subr.mxu0 0.0
    %190 = vmatpush1.msra.mxu0 0.0
    %191 = vmatprep.subr.mxu0 0.0
    %192 = vmatpush1.msra.mxu0 0.0
    %193 = vmatprep.subr.mxu0 0.0
    %194 = vmatpush1.msra.mxu0 0.0
    %195 = vmatprep.subr.mxu0 0.0
    %196 = vmatpush1.msra.mxu0 0.0
    %197 = vmatprep.mubr.f32.mxu0 0.0
    %198 = vmatmul.mubr.f32.gmra.mrb[0].mxu0 %v131
    %v199 = vpop.f32.mrb[0].mxu0
    %v200 = vadd.f32 0.0, %v199
    %v201 = vpop.f32.mrb[0].mxu0
    %202 = vdwg.mxu0
    %v204 = vsel %vm129, %v111, 0
    %206 = vmatprep.subr.mxu0 0.0
    %207 = vmatpush1.msra.mxu0 %v113
    %208 = vmatprep.subr.mxu0 0.0
    %209 = vmatpush1.msra.mxu0 %v114
    %210 = vmatprep.subr.mxu0 0.0
    %211 = vmatpush1.msra.mxu0 %v115
    %212 = vmatprep.subr.mxu0 0.0
    %213 = vmatpush1.msra.mxu0 %v116
    %214 = vmatprep.subr.mxu0 0.0
    %215 = vmatpush1.msra.mxu0 %v117
    %216 = vmatprep.subr.mxu0 0.0
    %217 = vmatpush1.msra.mxu0 %v118
    %218 = vmatprep.subr.mxu0 0.0
    %219 = vmatpush1.msra.mxu0 %v119
    %220 = vmatprep.subr.mxu0 0.0
    %221 = vmatpush1.msra.mxu0 %v120
    %222 = vmatprep.subr.mxu0 0.0
    %223 = vmatpush1.msra.mxu0 0.0
    %224 = vmatprep.subr.mxu0 0.0
    %225 = vmatpush1.msra.mxu0 0.0
    %226 = vmatprep.subr.mxu0 0.0
    %227 = vmatpush1.msra.mxu0 0.0
    %228 = vmatprep.subr.mxu0 0.0
    %229 = vmatpush1.msra.mxu0 0.0
    %230 = vmatprep.subr.mxu0 0.0
    %231 = vmatpush1.msra.mxu0 0.0
    %232 = vmatprep.subr.mxu0 0.0
    %233 = vmatpush1.msra.mxu0 0.0
    %234 = vmatprep.subr.mxu0 0.0
    %235 = vmatpush1.msra.mxu0 0.0
    %236 = vmatprep.subr.mxu0 0.0
    %237 = vmatpush1.msra.mxu0 0.0
    %238 = vmatprep.subr.mxu0 0.0
    %239 = vmatpush1.msra.mxu0 0.0
    %240 = vmatprep.subr.mxu0 0.0
    %241 = vmatpush1.msra.mxu0 0.0
    %242 = vmatprep.subr.mxu0 0.0
    %243 = vmatpush1.msra.mxu0 0.0
    %244 = vmatprep.subr.mxu0 0.0
    %245 = vmatpush1.msra.mxu0 0.0
    %246 = vmatprep.subr.mxu0 0.0
    %247 = vmatpush1.msra.mxu0 0.0
    %248 = vmatprep.subr.mxu0 0.0
    %249 = vmatpush1.msra.mxu0 0.0
    %250 = vmatprep.subr.mxu0 0.0
    %251 = vmatpush1.msra.mxu0 0.0
    %252 = vmatprep.subr.mxu0 0.0
    %253 = vmatpush1.msra.mxu0 0.0
    %254 = vmatprep.subr.mxu0 0.0
    %255 = vmatpush1.msra.mxu0 0.0
    %256 = vmatprep.subr.mxu0 0.0
    %257 = vmatpush1.msra.mxu0 0.0
    %258 = vmatprep.subr.mxu0 0.0
    %259 = vmatpush1.msra.mxu0 0.0
    %260 = vmatprep.subr.mxu0 0.0
    %261 = vmatpush1.msra.mxu0 0.0
    %262 = vmatprep.subr.mxu0 0.0
    %263 = vmatpush1.msra.mxu0 0.0
    %264 = vmatprep.subr.mxu0 0.0
    %265 = vmatpush1.msra.mxu0 0.0
    %266 = vmatprep.subr.mxu0 0.0
    %267 = vmatpush1.msra.mxu0 0.0
    %268 = vmatprep.subr.mxu0 0.0
    %269 = vmatpush1.msra.mxu0 0.0
    %270 = vmatprep.mubr.f32.mxu0 0.0
    %271 = vmatmul.mubr.f32.gmra.mrb[0].mxu0 %v204
    %v272 = vpop.f32.mrb[0].mxu0
    %v273 = vadd.f32 %v200, %v272
    %v274 = vpop.f32.mrb[0].mxu0
    %275 = vdwg.mxu0
    %v276 = vld [vmem:[%s5] sm:$0x1]
    %v278 = vlaneseq
    %v279 = vshrl.u32 %v278, 7
    %v280 = vsub.s32 0, %v279
    %v281 = vrot.slane %v276, %v280
    %v283 = vadd.f32 %v273, %v281
    %v284 = vld [vmem:[#allocation7] sm:$0xff]
    %v285 = vld [vmem:[#allocation7 + $0x8] sm:$0xff]
    %v286 = vld [vmem:[#allocation7 + $0x10] sm:$0xff]
    %v287 = vld [vmem:[#allocation7 + $0x18] sm:$0xff]
    %v288 = vld [vmem:[#allocation7 + $0x20] sm:$0xff]
    %v289 = vld [vmem:[#allocation7 + $0x28] sm:$0xff]
    %v290 = vld [vmem:[#allocation7 + $0x30] sm:$0xff]
    %v291 = vld [vmem:[#allocation7 + $0x38] sm:$0xff]
    %292 = vmatprep.subr.mxu0 0.0
    %293 = vmatpush1.msra.mxu0 %v284
    %294 = vmatprep.subr.mxu0 0.0
    %295 = vmatpush1.msra.mxu0 %v285
    %296 = vmatprep.subr.mxu0 0.0
    %297 = vmatpush1.msra.mxu0 %v286
    %298 = vmatprep.subr.mxu0 0.0
    %299 = vmatpush1.msra.mxu0 %v287
    %300 = vmatprep.subr.mxu0 0.0
    %301 = vmatpush1.msra.mxu0 %v288
    %302 = vmatprep.subr.mxu0 0.0
    %303 = vmatpush1.msra.mxu0 %v289
    %304 = vmatprep.subr.mxu0 0.0
    %305 = vmatpush1.msra.mxu0 %v290
    %306 = vmatprep.subr.mxu0 0.0
    %307 = vmatpush1.msra.mxu0 %v291
    %308 = vmatprep.subr.mxu0 0.0
    %309 = vmatpush1.msra.mxu0 0.0
    %310 = vmatprep.subr.mxu0 0.0
    %311 = vmatpush1.msra.mxu0 0.0
    %312 = vmatprep.subr.mxu0 0.0
    %313 = vmatpush1.msra.mxu0 0.0
    %314 = vmatprep.subr.mxu0 0.0
    %315 = vmatpush1.msra.mxu0 0.0
    %316 = vmatprep.subr.mxu0 0.0
    %317 = vmatpush1.msra.mxu0 0.0
    %318 = vmatprep.subr.mxu0 0.0
    %319 = vmatpush1.msra.mxu0 0.0
    %320 = vmatprep.subr.mxu0 0.0
    %321 = vmatpush1.msra.mxu0 0.0
    %322 = vmatprep.subr.mxu0 0.0
    %323 = vmatpush1.msra.mxu0 0.0
    %324 = vmatprep.subr.mxu0 0.0
    %325 = vmatpush1.msra.mxu0 0.0
    %326 = vmatprep.subr.mxu0 0.0
    %327 = vmatpush1.msra.mxu0 0.0
    %328 = vmatprep.subr.mxu0 0.0
    %329 = vmatpush1.msra.mxu0 0.0
    %330 = vmatprep.subr.mxu0 0.0
    %331 = vmatpush1.msra.mxu0 0.0
    %332 = vmatprep.subr.mxu0 0.0
    %333 = vmatpush1.msra.mxu0 0.0
    %334 = vmatprep.subr.mxu0 0.0
    %335 = vmatpush1.msra.mxu0 0.0
    %336 = vmatprep.subr.mxu0 0.0
    %337 = vmatpush1.msra.mxu0 0.0
    %338 = vmatprep.subr.mxu0 0.0
    %339 = vmatpush1.msra.mxu0 0.0
    %340 = vmatprep.subr.mxu0 0.0
    %341 = vmatpush1.msra.mxu0 0.0
    %342 = vmatprep.subr.mxu0 0.0
    %343 = vmatpush1.msra.mxu0 0.0
    %344 = vmatprep.subr.mxu0 0.0
    %345 = vmatpush1.msra.mxu0 0.0
    %346 = vmatprep.subr.mxu0 0.0
    %347 = vmatpush1.msra.mxu0 0.0
    %348 = vmatprep.subr.mxu0 0.0
    %349 = vmatpush1.msra.mxu0 0.0
    %350 = vmatprep.subr.mxu0 0.0
    %351 = vmatpush1.msra.mxu0 0.0
    %352 = vmatprep.subr.mxu0 0.0
    %353 = vmatpush1.msra.mxu0 0.0
    %354 = vmatprep.subr.mxu0 0.0
    %355 = vmatpush1.msra.mxu0 0.0
    %356 = vmatprep.mubr.f32.mxu0 0.0
    %357 = vmatmul.mubr.f32.gmra.mrb[0].mxu0 %v204
    %v358 = vpop.f32.mrb[0].mxu0
    %v359 = vadd.f32 %v283, %v358
    %v360 = vpop.f32.mrb[0].mxu0
    %361 = vdwg.mxu0
    %v362 = vld [vmem:[#allocation11] sm:$0xff]
    %v363 = vld [vmem:[#allocation11 + $0x8] sm:$0xff]
    %v364 = vld [vmem:[#allocation11 + $0x10] sm:$0xff]
    %v365 = vld [vmem:[#allocation11 + $0x18] sm:$0xff]
    %v366 = vld [vmem:[#allocation11 + $0x20] sm:$0xff]
    %v367 = vld [vmem:[#allocation11 + $0x28] sm:$0xff]
    %v368 = vld [vmem:[#allocation11 + $0x30] sm:$0xff]
    %v369 = vld [vmem:[#allocation11 + $0x38] sm:$0xff]
    %v370 = vld [vmem:[#allocation11 + $0x40] sm:$0xff]
    %v371 = vld [vmem:[#allocation11 + $0x48] sm:$0xff]
    %v372 = vld [vmem:[#allocation11 + $0x50] sm:$0xff]
    %v373 = vld [vmem:[#allocation11 + $0x58] sm:$0xff]
    %v374 = vld [vmem:[#allocation11 + $0x60] sm:$0xff]
    %v375 = vld [vmem:[#allocation11 + $0x68] sm:$0xff]
    %v376 = vld [vmem:[#allocation11 + $0x70] sm:$0xff]
    %v377 = vld [vmem:[#allocation11 + $0x78] sm:$0xff]
    %v378 = vld [vmem:[%s7] sm:$0x1]
    %v380 = vlaneseq
    %v381 = vshrl.u32 %v380, 7
    %v382 = vsub.s32 0, %v381
    %v383 = vrot.slane %v378, %v382
    %385 = vmatprep.subr.mxu0 0.0
    %386 = vmatpush1.msra.mxu0 %v362
    %387 = vmatprep.subr.mxu0 0.0
    %388 = vmatpush1.msra.mxu0 %v363
    %389 = vmatprep.subr.mxu0 0.0
    %390 = vmatpush1.msra.mxu0 %v364
    %391 = vmatprep.subr.mxu0 0.0
    %392 = vmatpush1.msra.mxu0 %v365
    %393 = vmatprep.subr.mxu0 0.0
    %394 = vmatpush1.msra.mxu0 %v366
    %395 = vmatprep.subr.mxu0 0.0
    %396 = vmatpush1.msra.mxu0 %v367
    %397 = vmatprep.subr.mxu0 0.0
    %398 = vmatpush1.msra.mxu0 %v368
    %399 = vmatprep.subr.mxu0 0.0
    %400 = vmatpush1.msra.mxu0 %v369
    %401 = vmatprep.subr.mxu0 0.0
    %402 = vmatpush1.msra.mxu0 %v370
    %403 = vmatprep.subr.mxu0 0.0
    %404 = vmatpush1.msra.mxu0 %v371
    %405 = vmatprep.subr.mxu0 0.0
    %406 = vmatpush1.msra.mxu0 %v372
    %407 = vmatprep.subr.mxu0 0.0
    %408 = vmatpush1.msra.mxu0 %v373
    %409 = vmatprep.subr.mxu0 0.0
    %410 = vmatpush1.msra.mxu0 %v374
    %411 = vmatprep.subr.mxu0 0.0
    %412 = vmatpush1.msra.mxu0 %v375
    %413 = vmatprep.subr.mxu0 0.0
    %414 = vmatpush1.msra.mxu0 %v376
    %415 = vmatprep.subr.mxu0 0.0
    %416 = vmatpush1.msra.mxu0 %v377
    %417 = vmatprep.subr.mxu0 0.0
    %418 = vmatpush1.msra.mxu0 0.0
    %419 = vmatprep.subr.mxu0 0.0
    %420 = vmatpush1.msra.mxu0 0.0
    %421 = vmatprep.subr.mxu0 0.0
    %422 = vmatpush1.msra.mxu0 0.0
    %423 = vmatprep.subr.mxu0 0.0
    %424 = vmatpush1.msra.mxu0 0.0
    %425 = vmatprep.subr.mxu0 0.0
    %426 = vmatpush1.msra.mxu0 0.0
    %427 = vmatprep.subr.mxu0 0.0
    %428 = vmatpush1.msra.mxu0 0.0
    %429 = vmatprep.subr.mxu0 0.0
    %430 = vmatpush1.msra.mxu0 0.0
    %431 = vmatprep.subr.mxu0 0.0
    %432 = vmatpush1.msra.mxu0 0.0
    %433 = vmatprep.subr.mxu0 0.0
    %434 = vmatpush1.msra.mxu0 0.0
    %435 = vmatprep.subr.mxu0 0.0
    %436 = vmatpush1.msra.mxu0 0.0
    %437 = vmatprep.subr.mxu0 0.0
    %438 = vmatpush1.msra.mxu0 0.0
    %439 = vmatprep.subr.mxu0 0.0
    %440 = vmatpush1.msra.mxu0 0.0
    %441 = vmatprep.subr.mxu0 0.0
    %442 = vmatpush1.msra.mxu0 0.0
    %443 = vmatprep.subr.mxu0 0.0
    %444 = vmatpush1.msra.mxu0 0.0
    %445 = vmatprep.subr.mxu0 0.0
    %446 = vmatpush1.msra.mxu0 0.0
    %447 = vmatprep.subr.mxu0 0.0
    %448 = vmatpush1.msra.mxu0 0.0
    %449 = vmatprep.mubr.f32.mxu0 0.0
    %450 = vmatmul.mubr.f32.gmra.mrb[0].mxu0 %v359
    %v451 = vpop.f32.mrb[0].mxu0
    %v452 = vadd.f32 %v383, %v451
    %v453 = vpop.f32.mrb[0].mxu0
    %454 = vdwg.mxu0
    %455 = vst [vmem:[#allocation13] sm:$0xff] %v452
    %456 = vst [vmem:[#allocation14] sm:$0xff] %v359
    // Predicated region
    $region58: #{tpu_custom_call.1} parent=1 // pred_check
      _
    $region59: #{tpu_custom_call.1} parent=1 // pred_check_branch
      %458 = sbr.rel (0) target = $region61
    $region60: #{tpu_custom_call.1} parent=1 // pred_region
      %s460 = ssub.s32 128, 128
      %461 = vsyncadd [#allocation4], %s460
      %s463 = sshll.u32 [#allocation13], 4
      %s464 = int_to_ptr.vmem [resolvable:$true] %s463
      %466 = dma.vmem_to_hbm [thread:$0]  %s464, 128, %s8, [#allocation4]
    $region61: #{tpu_custom_call.1} parent=1 // pred_fallthru
      _
    // Predicated region
    $region62: #{tpu_custom_call.1} parent=1 // pred_check
      _
    $region63: #{tpu_custom_call.1} parent=1 // pred_check_branch
      %468 = sbr.rel (0) target = $region65
    $region64: #{tpu_custom_call.1} parent=1 // pred_region
      %s470 = ssub.s32 128, 128
      %471 = vsyncadd [#allocation15], %s470
      %s473 = sshll.u32 [#allocation14], 4
      %s474 = int_to_ptr.vmem [resolvable:$true] %s473
      %476 = dma.vmem_to_hbm [thread:$0]  %s474, 128, %s9, [#allocation15]
    $region65: #{tpu_custom_call.1} parent=1 // pred_fallthru
      _
    // Predicated region
    $region66: #{tpu_custom_call.1} parent=1 // pred_check
      _
    $region67: #{tpu_custom_call.1} parent=1 // pred_check_branch
      %478 = sbr.rel (0) target = $region69
    $region68: #{tpu_custom_call.1} parent=1 // pred_region
      %479 = dma.done [#allocation4], 128
    $region69: #{tpu_custom_call.1} parent=1 // pred_fallthru
      _
    // Predicated region
    $region70: #{tpu_custom_call.1} parent=1 // pred_check
      _
    $region71: #{tpu_custom_call.1} parent=1 // pred_check_branch
      %481 = sbr.rel (0) target = $region73
    $region72: #{tpu_custom_call.1} parent=1 // pred_region
      %482 = dma.done [#allocation15], 128
    $region73: #{tpu_custom_call.1} parent=1 // pred_fallthru
      _
    %483 = vsyncpa [#allocation3], 1
    %484 = vsyncpa [#allocation6], 1
    %485 = vsyncpa [#allocation9], 1
    %486 = vsyncpa [#allocation12], 1
    %487 = vsyncpa [#allocation4], 1
    %488 = vsyncpa [#allocation15], 1

</llo_original>
